<compile_context>
chip_gen: v7x
topology: tpu7x:2x2x1
jax: 0.10.0
libtpu: 0.0.40
codegen_flags: <defaults>
</compile_context>

<pallas_src>
import functools

import jax
import jax.numpy as jnp
from jax import lax
from jax.experimental import pallas as pl
from jax.experimental.pallas import tpu as pltpu


def color_supervised_kernel(maxlen_ref, gx_ref, len_ref, w_hh_ref, b_hn_ref,
                            w1_ref, b1_ref, w2_ref, b2_ref, out_ref, h_ref,
                            *, hidden_dim, t_tile):
    """One (batch_tile, time_tile) grid step.

    maxlen_ref: (1,) i32 SMEM (scalar prefetch) -- max(length) over the batch
    gx_ref:     (t_tile, B_tile, 3H) bf16       -- x_t @ W_ih^T + b_ih (+ b_hr/b_hz folded)
    len_ref:    (B_tile, 1) i32
    w_hh_ref:   (H, 3H) bf16
    b_hn_ref:   (1, H) f32                      -- hidden bias of "new" gate (inside r*(.))
    w1_ref:     (H, H//4) bf16   b1_ref: (1, H//4) f32
    w2_ref:     (H//4, 128) bf16 b2_ref: (1, 128) f32   (lane-padded from 3)
    out_ref:    (B_tile, 128) f32               -- resident across the time axis
    h_ref:      (B_tile, H) f32 VMEM scratch    -- recurrent carry across time tiles
    """
    H = hidden_dim
    B = h_ref.shape[0]
    t_idx = pl.program_id(1)
    t0 = t_idx * t_tile

    @pl.when(t_idx == 0)
    def _init():
        h_ref[...] = jnp.zeros_like(h_ref)

    # Skip time tiles that lie entirely past the longest sequence in the batch.
    @pl.when(t0 < maxlen_ref[0])
    def _recurrence():
        lengths = len_ref[...]                                  # (B, 1) i32
        b_hn = jnp.broadcast_to(b_hn_ref[...], (B, H))          # hoisted out of the loop

        def step(s, h):
            gx = gx_ref[s].astype(jnp.float32)                  # (B, 3H)
            gh = jnp.dot(h.astype(jnp.bfloat16), w_hh_ref[...],
                         preferred_element_type=jnp.float32)    # (B, 3H)
            # sigmoid(x) = 0.5*tanh(0.5*x) + 0.5 -> single EUP op per gate.
            r = 0.5 * jnp.tanh(0.5 * (gx[:, 0 * H:1 * H] + gh[:, 0 * H:1 * H])) + 0.5
            z = 0.5 * jnp.tanh(0.5 * (gx[:, 1 * H:2 * H] + gh[:, 1 * H:2 * H])) + 0.5
            n = jnp.tanh(gx[:, 2 * H:3 * H] + r * (gh[:, 2 * H:3 * H] + b_hn))
            h_new = (1.0 - z) * n + z * h
            # Freeze finished sequences (== pack_padded_sequence semantics).
            return jnp.where(lengths > (t0 + s), h_new, h)

        # T_tile is the (bounded) unroll factor of the serial recurrence.
        h_ref[...] = lax.fori_loop(0, t_tile, step, h_ref[...], unroll=True)

    @pl.when(t_idx == pl.num_programs(1) - 1)
    def _head():
        hid = jnp.dot(h_ref[...].astype(jnp.bfloat16), w1_ref[...],
                      preferred_element_type=jnp.float32) + b1_ref[...]
        hid = jnp.maximum(hid, 0.0)
        out = jnp.dot(hid.astype(jnp.bfloat16), w2_ref[...],
                      preferred_element_type=jnp.float32) + b2_ref[...]
        out_ref[...] = jax.nn.sigmoid(out).astype(out_ref.dtype)


def init_params(key, vocab_size, embedding_dim, hidden_dim):
    """Deterministic synthetic parameters, PyTorch shapes stored transposed."""
    H, E, H4 = hidden_dim, embedding_dim, hidden_dim // 4
    ks = jax.random.split(key, 9)
    s_gru = 1.0 / jnp.sqrt(H)
    s_l1 = 1.0 / jnp.sqrt(H)
    s_l2 = 1.0 / jnp.sqrt(H4)
    u = lambda k, shape, s: jax.random.uniform(k, shape, jnp.float32, -s, s)
    return {
        "emb":  jax.random.normal(ks[0], (vocab_size, E), jnp.float32),
        "w_ih": u(ks[1], (E, 3 * H), s_gru),      # (3H, E) transposed
        "w_hh": u(ks[2], (H, 3 * H), s_gru),      # (3H, H) transposed
        "b_ih": u(ks[3], (1, 3 * H), s_gru),
        "b_hh": u(ks[4], (1, 3 * H), s_gru),
        "w1":   u(ks[5], (H, H4), s_l1),          # (H//4, H) transposed
        "b1":   u(ks[6], (1, H4), s_l1),
        "w2":   u(ks[7], (H4, 3), s_l2),          # (3, H//4) transposed
        "b2":   u(ks[8], (1, 3), s_l2),
    }


def color_supervised_forward(params, seq, length, *, hidden_dim, t_tile=8):
    H = hidden_dim
    H4 = H // 4
    assert H % 128 == 0, "hidden_dim must be a multiple of 128 (lane-aligned gate slices)"
    B, T = seq.shape

    # Batch padding: multiples of 16 rows (bf16 sublane packing); tile at <=128 rows.
    if B <= 128:
        B_tile = max(16, -(-B // 16) * 16)
        B_pad = B_tile
    else:
        B_tile = 128
        B_pad = -(-B // 128) * 128
    t_tile = min(t_tile, T)
    T_pad = -(-T // t_tile) * t_tile
    n_bt, n_tt = B_pad // B_tile, T_pad // t_tile

    # Fused embedding + input projection table. Fold the r/z hidden biases in;
    # b_hn must stay inside r*(.) (exact PyTorch GRU) so it is passed separately.
    b_hh = params["b_hh"]
    b_fold = jnp.concatenate([b_hh[:, :2 * H], jnp.zeros((1, H), b_hh.dtype)], axis=1)
    gx_table = params["emb"] @ params["w_ih"] + params["b_ih"] + b_fold   # (V, 3H)

    gx_all = gx_table[seq.T]                                              # (T, B, 3H)
    gx_all = jnp.pad(gx_all, ((0, T_pad - T), (0, B_pad - B), (0, 0)))
    gx_all = gx_all.astype(jnp.bfloat16)          # halve HBM->VMEM DMA bytes

    # Padded rows get length=0 so their hidden state stays zero (discarded below).
    lengths = jnp.pad(length.astype(jnp.int32), (0, B_pad - B)).reshape(B_pad, 1)
    max_len = jnp.max(length).astype(jnp.int32).reshape(1)

    w_hh = params["w_hh"].astype(jnp.bfloat16)
    b_hn = b_hh[:, 2 * H:]
    w1 = params["w1"].astype(jnp.bfloat16)
    b1 = params["b1"]
    # Lane-dense head: pad the 3-wide output projection to 128 lanes.
    w2 = jnp.pad(params["w2"], ((0, 0), (0, 128 - 3))).astype(jnp.bfloat16)
    b2 = jnp.pad(params["b2"], ((0, 0), (0, 128 - 3)))

    kernel = functools.partial(color_supervised_kernel, hidden_dim=H, t_tile=t_tile)

    grid_spec = pltpu.PrefetchScalarGridSpec(
        num_scalar_prefetch=1,
        grid=(n_bt, n_tt),
        in_specs=[
            pl.BlockSpec((t_tile, B_tile, 3 * H), lambda b, t, ml: (t, b, 0)),  # gx (streamed)
            pl.BlockSpec((B_tile, 1), lambda b, t, ml: (b, 0)),                 # lengths
            pl.BlockSpec((H, 3 * H), lambda b, t, ml: (0, 0)),                  # w_hh
            pl.BlockSpec((1, H), lambda b, t, ml: (0, 0)),                      # b_hn
            pl.BlockSpec((H, H4), lambda b, t, ml: (0, 0)),                     # w1
            pl.BlockSpec((1, H4), lambda b, t, ml: (0, 0)),                     # b1
            pl.BlockSpec((H4, 128), lambda b, t, ml: (0, 0)),                   # w2
            pl.BlockSpec((1, 128), lambda b, t, ml: (0, 0)),                    # b2
        ],
        out_specs=pl.BlockSpec((B_tile, 128), lambda b, t, ml: (b, 0)),
        scratch_shapes=[pltpu.VMEM((B_tile, H), jnp.float32)],                  # hidden carry
    )

    # Explicit VMEM budget (v7x has 64 MiB physical / 32 MiB scoped default).
    gx_tile_bytes = t_tile * B_tile * 3 * H * 2
    weight_bytes = 2 * (H * 3 * H + H * H4 + H4 * 128)
    misc_bytes = 4 * (H + H4 + 128 + 2 * B_tile) + B_tile * H * 4 + B_tile * 128 * 4
    vmem_limit = int(min(max(2 * gx_tile_bytes + 2 * weight_bytes + 2 * misc_bytes
                             + (8 << 20), 32 << 20), 48 << 20))

    out = pl.pallas_call(
        kernel,
        out_shape=jax.ShapeDtypeStruct((B_pad, 128), jnp.float32),
        grid_spec=grid_spec,
        compiler_params=pltpu.CompilerParams(
            dimension_semantics=("parallel", "arbitrary"),   # batch tiles -> 2 TCs on v7x
            vmem_limit_bytes=vmem_limit),
    )(max_len, gx_all, lengths, w_hh, b_hn, w1, b1, w2, b2)
    return out[:B, :3]


def color_supervised_reference(params, seq, length, *, hidden_dim):
    """Pure-JAX f32 reference replicating packed-GRU + MLP semantics."""
    H = hidden_dim
    B, T = seq.shape
    embed = params["emb"][seq]                      # (B, T, E)
    lengths = length.astype(jnp.int32).reshape(B, 1)
    h = jnp.zeros((B, H), jnp.float32)
    for t in range(T):
        x_t = embed[:, t, :]
        gx = x_t @ params["w_ih"] + params["b_ih"]
        gh = h @ params["w_hh"] + params["b_hh"]
        r = jax.nn.sigmoid(gx[:, :H] + gh[:, :H])
        z = jax.nn.sigmoid(gx[:, H:2 * H] + gh[:, H:2 * H])
        n = jnp.tanh(gx[:, 2 * H:] + r * gh[:, 2 * H:])
        h_new = (1.0 - z) * n + z * h
        h = jnp.where(lengths > t, h_new, h)
    hid = jnp.maximum(h @ params["w1"] + params["b1"], 0.0)
    return jax.nn.sigmoid(hid @ params["w2"] + params["b2"])


if __name__ == "__main__":
    VOCAB, EMB, HID = 20, 64, 256   # hidden_dim matches the PyTorch default
    B, T = 4, 8

    key = jax.random.PRNGKey(0)
    k_param, k_seq, k_len = jax.random.split(key, 3)

    params = init_params(k_param, VOCAB, EMB, HID)
    seq = jax.random.randint(k_seq, (B, T), 0, VOCAB, dtype=jnp.int32)
    length = jax.random.randint(k_len, (B,), 1, T + 1, dtype=jnp.int32)

    # t_tile=4 -> two time tiles: exercises the streamed grid + scratch carry.
    out = color_supervised_forward(params, seq, length, hidden_dim=HID, t_tile=4)
    out = jax.block_until_ready(out)

    ref = color_supervised_reference(params, seq, length, hidden_dim=HID)
    assert out.shape == (B, 3)
    # bf16 matmul operands / bf16 gx storage with f32 accumulation -> bf16-level tolerance.
    assert jnp.allclose(out, ref, atol=3e-2, rtol=0.0), (out, ref)

    print("KERNEL_OK")
</pallas_src>

<mosaic_0001>
module attributes {stable_mosaic.version = 11 : i64} {
  func.func @color_supervised_kernel(%arg0: i32, %arg1: i32, %arg2: memref<1xi32, #tpu.memory_space<smem>>, %arg3: memref<4x16x768xbf16, #tpu.memory_space<vmem>>, %arg4: memref<16x1xi32, #tpu.memory_space<vmem>>, %arg5: memref<256x768xbf16, #tpu.memory_space<vmem>>, %arg6: memref<1x256xf32, #tpu.memory_space<vmem>>, %arg7: memref<256x64xbf16, #tpu.memory_space<vmem>>, %arg8: memref<1x64xf32, #tpu.memory_space<vmem>>, %arg9: memref<64x128xbf16, #tpu.memory_space<vmem>>, %arg10: memref<1x128xf32, #tpu.memory_space<vmem>>, %arg11: memref<16x128xf32, #tpu.memory_space<vmem>>, %arg12: memref<16x256xf32, #tpu.memory_space<vmem>>) attributes {dimension_semantics = [#tpu.dimension_semantics<parallel>, #tpu.dimension_semantics<arbitrary>], iteration_bounds = array<i64: 1, 2>, scalar_prefetch = 1 : i64, scratch_operands = 1 : i64, tpu.core_type = #tpu.core_type<tc>, window_params = [{transform_indices = @transform_0, window_bounds = array<i64: 4, 16, 768>}, {transform_indices = @transform_1, window_bounds = array<i64: 16, 1>}, {pipeline_mode = #tpu.pipeline_mode<synchronous>, transform_indices = @transform_2, window_bounds = array<i64: 256, 768>}, {pipeline_mode = #tpu.pipeline_mode<synchronous>, transform_indices = @transform_3, window_bounds = array<i64: 1, 256>}, {pipeline_mode = #tpu.pipeline_mode<synchronous>, transform_indices = @transform_4, window_bounds = array<i64: 256, 64>}, {pipeline_mode = #tpu.pipeline_mode<synchronous>, transform_indices = @transform_5, window_bounds = array<i64: 1, 64>}, {pipeline_mode = #tpu.pipeline_mode<synchronous>, transform_indices = @transform_6, window_bounds = array<i64: 64, 128>}, {pipeline_mode = #tpu.pipeline_mode<synchronous>, transform_indices = @transform_7, window_bounds = array<i64: 1, 128>}, {transform_indices = @transform_8, window_bounds = array<i64: 16, 128>}]} {
    %c4_i32 = arith.constant 4 : i32
    %0 = arith.muli %arg1, %c4_i32 : i32
    %c0_i32 = arith.constant 0 : i32
    %1 = arith.cmpi eq, %arg1, %c0_i32 : i32
    %2 = arith.extui %1 : i1 to i32
    %c0_i32_0 = arith.constant 0 : i32
    %3 = arith.cmpi ne, %2, %c0_i32_0 : i32
    scf.if %3 {
      %cst = arith.constant 0.000000e+00 : f32
      %11 = vector.broadcast %cst : f32 to vector<16x256xf32>
      %c0_3 = arith.constant 0 : index
      %c0_4 = arith.constant 0 : index
      %12 = vector.load %arg12[%c0_3, %c0_4] : memref<16x256xf32, #tpu.memory_space<vmem>>, vector<16x256xf32>
      tpu.vector_store %arg12[%c0_3, %c0_4], %11 {strides = array<i32>} : memref<16x256xf32, #tpu.memory_space<vmem>>, vector<16x256xf32>,
    } else {
    }
    %c0 = arith.constant 0 : index
    %4 = memref.load %arg2[%c0] : memref<1xi32, #tpu.memory_space<smem>>
    %5 = arith.cmpi slt, %0, %4 : i32
    %6 = arith.extui %5 : i1 to i32
    %c0_i32_1 = arith.constant 0 : i32
    %7 = arith.cmpi ne, %6, %c0_i32_1 : i32
    scf.if %7 {
      %c0_3 = arith.constant 0 : index
      %c0_4 = arith.constant 0 : index
      %11 = vector.load %arg4[%c0_3, %c0_4] : memref<16x1xi32, #tpu.memory_space<vmem>>, vector<16x1xi32>
      %c0_5 = arith.constant 0 : index
      %c0_6 = arith.constant 0 : index
      %12 = vector.load %arg6[%c0_5, %c0_6] : memref<1x256xf32, #tpu.memory_space<vmem>>, vector<1x256xf32>
      %13 = vector.shape_cast %12 : vector<1x256xf32> to vector<1x256xf32>
      %14 = vector.broadcast %13 : vector<1x256xf32> to vector<16x256xf32>
      %c0_7 = arith.constant 0 : index
      %c0_8 = arith.constant 0 : index
      %15 = vector.load %arg12[%c0_7, %c0_8] : memref<16x256xf32, #tpu.memory_space<vmem>>, vector<16x256xf32>
      %c0_i32_9 = arith.constant 0 : i32
      %16 = arith.index_cast %c0_i32_9 : i32 to index
      %c0_10 = arith.constant 0 : index
      %c0_11 = arith.constant 0 : index
      %17 = vector.load %arg3[%16, %c0_10, %c0_11] : memref<4x16x768xbf16, #tpu.memory_space<vmem>>, vector<1x16x768xbf16>
      %18 = vector.shape_cast %17 : vector<1x16x768xbf16> to vector<16x768xbf16>
      %19 = arith.extf %18 : vector<16x768xbf16> to vector<16x768xf32>
      %20 = arith.truncf %15 : vector<16x256xf32> to vector<16x256xbf16>
      %c0_12 = arith.constant 0 : index
      %c0_13 = arith.constant 0 : index
      %21 = vector.load %arg5[%c0_12, %c0_13] : memref<256x768xbf16, #tpu.memory_space<vmem>>, vector<256x768xbf16>
      %cst = arith.constant dense<0.000000e+00> : vector<16x768xf32>
      %22 = tpu.matmul %20, %21, %cst {dimension_numbers = #tpu.dot_dimension_numbers<[1], [0], [0], [1], [0, 0, 1, 1], [], []>} : vector<16x256xbf16>, vector<256x768xbf16>, vector<16x768xf32> -> vector<16x768xf32>
      %23 = vector.extract_strided_slice %19 {offsets = [0, 0], sizes = [16, 256], strides = [1, 1]} : vector<16x768xf32> to vector<16x256xf32>
      %24 = vector.extract_strided_slice %22 {offsets = [0, 0], sizes = [16, 256], strides = [1, 1]} : vector<16x768xf32> to vector<16x256xf32>
      %25 = arith.addf %23, %24 : vector<16x256xf32>
      %cst_14 = arith.constant 5.000000e-01 : f32
      %26 = vector.broadcast %cst_14 : f32 to vector<16x256xf32>
      %27 = arith.mulf %26, %25 : vector<16x256xf32>
      %28 = math.tanh %27 : vector<16x256xf32>
      %cst_15 = arith.constant 5.000000e-01 : f32
      %29 = vector.broadcast %cst_15 : f32 to vector<16x256xf32>
      %30 = arith.mulf %29, %28 : vector<16x256xf32>
      %cst_16 = arith.constant 5.000000e-01 : f32
      %31 = vector.broadcast %cst_16 : f32 to vector<16x256xf32>
      %32 = arith.addf %30, %31 : vector<16x256xf32>
      %33 = vector.extract_strided_slice %19 {offsets = [0, 256], sizes = [16, 256], strides = [1, 1]} : vector<16x768xf32> to vector<16x256xf32>
      %34 = vector.extract_strided_slice %22 {offsets = [0, 256], sizes = [16, 256], strides = [1, 1]} : vector<16x768xf32> to vector<16x256xf32>
      %35 = arith.addf %33, %34 : vector<16x256xf32>
      %cst_17 = arith.constant 5.000000e-01 : f32
      %36 = vector.broadcast %cst_17 : f32 to vector<16x256xf32>
      %37 = arith.mulf %36, %35 : vector<16x256xf32>
      %38 = math.tanh %37 : vector<16x256xf32>
      %cst_18 = arith.constant 5.000000e-01 : f32
      %39 = vector.broadcast %cst_18 : f32 to vector<16x256xf32>
      %40 = arith.mulf %39, %38 : vector<16x256xf32>
      %cst_19 = arith.constant 5.000000e-01 : f32
      %41 = vector.broadcast %cst_19 : f32 to vector<16x256xf32>
      %42 = arith.addf %40, %41 : vector<16x256xf32>
      %43 = vector.extract_strided_slice %19 {offsets = [0, 512], sizes = [16, 256], strides = [1, 1]} : vector<16x768xf32> to vector<16x256xf32>
      %44 = vector.extract_strided_slice %22 {offsets = [0, 512], sizes = [16, 256], strides = [1, 1]} : vector<16x768xf32> to vector<16x256xf32>
      %45 = arith.addf %44, %14 : vector<16x256xf32>
      %46 = arith.mulf %32, %45 : vector<16x256xf32>
      %47 = arith.addf %43, %46 : vector<16x256xf32>
      %48 = math.tanh %47 : vector<16x256xf32>
      %cst_20 = arith.constant 1.000000e+00 : f32
      %49 = vector.broadcast %cst_20 : f32 to vector<16x256xf32>
      %50 = arith.subf %49, %42 : vector<16x256xf32>
      %51 = arith.mulf %50, %48 : vector<16x256xf32>
      %52 = arith.mulf %42, %15 : vector<16x256xf32>
      %53 = arith.addf %51, %52 : vector<16x256xf32>
      %54 = arith.addi %0, %c0_i32_9 : i32
      %55 = vector.broadcast %54 : i32 to vector<16x1xi32>
      %56 = arith.cmpi sgt, %11, %55 : vector<16x1xi32>
      %57 = vector.shape_cast %56 : vector<16x1xi1> to vector<16x1xi1>
      %58 = vector.broadcast %57 : vector<16x1xi1> to vector<16x256xi1>
      %59 = arith.select %58, %53, %15 : vector<16x256xi1>, vector<16x256xf32>
      %c1_i32_21 = arith.constant 1 : i32
      %60 = arith.index_cast %c1_i32_21 : i32 to index
      %c0_22 = arith.constant 0 : index
      %c0_23 = arith.constant 0 : index
      %61 = vector.load %arg3[%60, %c0_22, %c0_23] : memref<4x16x768xbf16, #tpu.memory_space<vmem>>, vector<1x16x768xbf16>
      %62 = vector.shape_cast %61 : vector<1x16x768xbf16> to vector<16x768xbf16>
      %63 = arith.extf %62 : vector<16x768xbf16> to vector<16x768xf32>
      %64 = arith.truncf %59 : vector<16x256xf32> to vector<16x256xbf16>
      %c0_24 = arith.constant 0 : index
      %c0_25 = arith.constant 0 : index
      %65 = vector.load %arg5[%c0_24, %c0_25] : memref<256x768xbf16, #tpu.memory_space<vmem>>, vector<256x768xbf16>
      %cst_26 = arith.constant dense<0.000000e+00> : vector<16x768xf32>
      %66 = tpu.matmul %64, %65, %cst_26 {dimension_numbers = #tpu.dot_dimension_numbers<[1], [0], [0], [1], [0, 0, 1, 1], [], []>} : vector<16x256xbf16>, vector<256x768xbf16>, vector<16x768xf32> -> vector<16x768xf32>
      %67 = vector.extract_strided_slice %63 {offsets = [0, 0], sizes = [16, 256], strides = [1, 1]} : vector<16x768xf32> to vector<16x256xf32>
      %68 = vector.extract_strided_slice %66 {offsets = [0, 0], sizes = [16, 256], strides = [1, 1]} : vector<16x768xf32> to vector<16x256xf32>
      %69 = arith.addf %67, %68 : vector<16x256xf32>
      %cst_27 = arith.constant 5.000000e-01 : f32
      %70 = vector.broadcast %cst_27 : f32 to vector<16x256xf32>
      %71 = arith.mulf %70, %69 : vector<16x256xf32>
      %72 = math.tanh %71 : vector<16x256xf32>
      %cst_28 = arith.constant 5.000000e-01 : f32
      %73 = vector.broadcast %cst_28 : f32 to vector<16x256xf32>
      %74 = arith.mulf %73, %72 : vector<16x256xf32>
      %cst_29 = arith.constant 5.000000e-01 : f32
      %75 = vector.broadcast %cst_29 : f32 to vector<16x256xf32>
      %76 = arith.addf %74, %75 : vector<16x256xf32>
      %77 = vector.extract_strided_slice %63 {offsets = [0, 256], sizes = [16, 256], strides = [1, 1]} : vector<16x768xf32> to vector<16x256xf32>
      %78 = vector.extract_strided_slice %66 {offsets = [0, 256], sizes = [16, 256], strides = [1, 1]} : vector<16x768xf32> to vector<16x256xf32>
      %79 = arith.addf %77, %78 : vector<16x256xf32>
      %cst_30 = arith.constant 5.000000e-01 : f32
      %80 = vector.broadcast %cst_30 : f32 to vector<16x256xf32>
      %81 = arith.mulf %80, %79 : vector<16x256xf32>
      %82 = math.tanh %81 : vector<16x256xf32>
      %cst_31 = arith.constant 5.000000e-01 : f32
      %83 = vector.broadcast %cst_31 : f32 to vector<16x256xf32>
      %84 = arith.mulf %83, %82 : vector<16x256xf32>
      %cst_32 = arith.constant 5.000000e-01 : f32
      %85 = vector.broadcast %cst_32 : f32 to vector<16x256xf32>
      %86 = arith.addf %84, %85 : vector<16x256xf32>
      %87 = vector.extract_strided_slice %63 {offsets = [0, 512], sizes = [16, 256], strides = [1, 1]} : vector<16x768xf32> to vector<16x256xf32>
      %88 = vector.extract_strided_slice %66 {offsets = [0, 512], sizes = [16, 256], strides = [1, 1]} : vector<16x768xf32> to vector<16x256xf32>
      %89 = arith.addf %88, %14 : vector<16x256xf32>
      %90 = arith.mulf %76, %89 : vector<16x256xf32>
      %91 = arith.addf %87, %90 : vector<16x256xf32>
      %92 = math.tanh %91 : vector<16x256xf32>
      %cst_33 = arith.constant 1.000000e+00 : f32
      %93 = vector.broadcast %cst_33 : f32 to vector<16x256xf32>
      %94 = arith.subf %93, %86 : vector<16x256xf32>
      %95 = arith.mulf %94, %92 : vector<16x256xf32>
      %96 = arith.mulf %86, %59 : vector<16x256xf32>
      %97 = arith.addf %95, %96 : vector<16x256xf32>
      %98 = arith.addi %0, %c1_i32_21 : i32
      %99 = vector.broadcast %98 : i32 to vector<16x1xi32>
      %100 = arith.cmpi sgt, %11, %99 : vector<16x1xi32>
      %101 = vector.shape_cast %100 : vector<16x1xi1> to vector<16x1xi1>
      %102 = vector.broadcast %101 : vector<16x1xi1> to vector<16x256xi1>
      %103 = arith.select %102, %97, %59 : vector<16x256xi1>, vector<16x256xf32>
      %c2_i32 = arith.constant 2 : i32
      %104 = arith.index_cast %c2_i32 : i32 to index
      %c0_34 = arith.constant 0 : index
      %c0_35 = arith.constant 0 : index
      %105 = vector.load %arg3[%104, %c0_34, %c0_35] : memref<4x16x768xbf16, #tpu.memory_space<vmem>>, vector<1x16x768xbf16>
      %106 = vector.shape_cast %105 : vector<1x16x768xbf16> to vector<16x768xbf16>
      %107 = arith.extf %106 : vector<16x768xbf16> to vector<16x768xf32>
      %108 = arith.truncf %103 : vector<16x256xf32> to vector<16x256xbf16>
      %c0_36 = arith.constant 0 : index
      %c0_37 = arith.constant 0 : index
      %109 = vector.load %arg5[%c0_36, %c0_37] : memref<256x768xbf16, #tpu.memory_space<vmem>>, vector<256x768xbf16>
      %cst_38 = arith.constant dense<0.000000e+00> : vector<16x768xf32>
      %110 = tpu.matmul %108, %109, %cst_38 {dimension_numbers = #tpu.dot_dimension_numbers<[1], [0], [0], [1], [0, 0, 1, 1], [], []>} : vector<16x256xbf16>, vector<256x768xbf16>, vector<16x768xf32> -> vector<16x768xf32>
      %111 = vector.extract_strided_slice %107 {offsets = [0, 0], sizes = [16, 256], strides = [1, 1]} : vector<16x768xf32> to vector<16x256xf32>
      %112 = vector.extract_strided_slice %110 {offsets = [0, 0], sizes = [16, 256], strides = [1, 1]} : vector<16x768xf32> to vector<16x256xf32>
      %113 = arith.addf %111, %112 : vector<16x256xf32>
      %cst_39 = arith.constant 5.000000e-01 : f32
      %114 = vector.broadcast %cst_39 : f32 to vector<16x256xf32>
      %115 = arith.mulf %114, %113 : vector<16x256xf32>
      %116 = math.tanh %115 : vector<16x256xf32>
      %cst_40 = arith.constant 5.000000e-01 : f32
      %117 = vector.broadcast %cst_40 : f32 to vector<16x256xf32>
      %118 = arith.mulf %117, %116 : vector<16x256xf32>
      %cst_41 = arith.constant 5.000000e-01 : f32
      %119 = vector.broadcast %cst_41 : f32 to vector<16x256xf32>
      %120 = arith.addf %118, %119 : vector<16x256xf32>
      %121 = vector.extract_strided_slice %107 {offsets = [0, 256], sizes = [16, 256], strides = [1, 1]} : vector<16x768xf32> to vector<16x256xf32>
      %122 = vector.extract_strided_slice %110 {offsets = [0, 256], sizes = [16, 256], strides = [1, 1]} : vector<16x768xf32> to vector<16x256xf32>
      %123 = arith.addf %121, %122 : vector<16x256xf32>
      %cst_42 = arith.constant 5.000000e-01 : f32
      %124 = vector.broadcast %cst_42 : f32 to vector<16x256xf32>
      %125 = arith.mulf %124, %123 : vector<16x256xf32>
      %126 = math.tanh %125 : vector<16x256xf32>
      %cst_43 = arith.constant 5.000000e-01 : f32
      %127 = vector.broadcast %cst_43 : f32 to vector<16x256xf32>
      %128 = arith.mulf %127, %126 : vector<16x256xf32>
      %cst_44 = arith.constant 5.000000e-01 : f32
      %129 = vector.broadcast %cst_44 : f32 to vector<16x256xf32>
      %130 = arith.addf %128, %129 : vector<16x256xf32>
      %131 = vector.extract_strided_slice %107 {offsets = [0, 512], sizes = [16, 256], strides = [1, 1]} : vector<16x768xf32> to vector<16x256xf32>
      %132 = vector.extract_strided_slice %110 {offsets = [0, 512], sizes = [16, 256], strides = [1, 1]} : vector<16x768xf32> to vector<16x256xf32>
      %133 = arith.addf %132, %14 : vector<16x256xf32>
      %134 = arith.mulf %120, %133 : vector<16x256xf32>
      %135 = arith.addf %131, %134 : vector<16x256xf32>
      %136 = math.tanh %135 : vector<16x256xf32>
      %cst_45 = arith.constant 1.000000e+00 : f32
      %137 = vector.broadcast %cst_45 : f32 to vector<16x256xf32>
      %138 = arith.subf %137, %130 : vector<16x256xf32>
      %139 = arith.mulf %138, %136 : vector<16x256xf32>
      %140 = arith.mulf %130, %103 : vector<16x256xf32>
      %141 = arith.addf %139, %140 : vector<16x256xf32>
      %142 = arith.addi %0, %c2_i32 : i32
      %143 = vector.broadcast %142 : i32 to vector<16x1xi32>
      %144 = arith.cmpi sgt, %11, %143 : vector<16x1xi32>
      %145 = vector.shape_cast %144 : vector<16x1xi1> to vector<16x1xi1>
      %146 = vector.broadcast %145 : vector<16x1xi1> to vector<16x256xi1>
      %147 = arith.select %146, %141, %103 : vector<16x256xi1>, vector<16x256xf32>
      %c3_i32 = arith.constant 3 : i32
      %148 = arith.index_cast %c3_i32 : i32 to index
      %c0_46 = arith.constant 0 : index
      %c0_47 = arith.constant 0 : index
      %149 = vector.load %arg3[%148, %c0_46, %c0_47] : memref<4x16x768xbf16, #tpu.memory_space<vmem>>, vector<1x16x768xbf16>
      %150 = vector.shape_cast %149 : vector<1x16x768xbf16> to vector<16x768xbf16>
      %151 = arith.extf %150 : vector<16x768xbf16> to vector<16x768xf32>
      %152 = arith.truncf %147 : vector<16x256xf32> to vector<16x256xbf16>
      %c0_48 = arith.constant 0 : index
      %c0_49 = arith.constant 0 : index
      %153 = vector.load %arg5[%c0_48, %c0_49] : memref<256x768xbf16, #tpu.memory_space<vmem>>, vector<256x768xbf16>
      %cst_50 = arith.constant dense<0.000000e+00> : vector<16x768xf32>
      %154 = tpu.matmul %152, %153, %cst_50 {dimension_numbers = #tpu.dot_dimension_numbers<[1], [0], [0], [1], [0, 0, 1, 1], [], []>} : vector<16x256xbf16>, vector<256x768xbf16>, vector<16x768xf32> -> vector<16x768xf32>
      %155 = vector.extract_strided_slice %151 {offsets = [0, 0], sizes = [16, 256], strides = [1, 1]} : vector<16x768xf32> to vector<16x256xf32>
      %156 = vector.extract_strided_slice %154 {offsets = [0, 0], sizes = [16, 256], strides = [1, 1]} : vector<16x768xf32> to vector<16x256xf32>
      %157 = arith.addf %155, %156 : vector<16x256xf32>
      %cst_51 = arith.constant 5.000000e-01 : f32
      %158 = vector.broadcast %cst_51 : f32 to vector<16x256xf32>
      %159 = arith.mulf %158, %157 : vector<16x256xf32>
      %160 = math.tanh %159 : vector<16x256xf32>
      %cst_52 = arith.constant 5.000000e-01 : f32
      %161 = vector.broadcast %cst_52 : f32 to vector<16x256xf32>
      %162 = arith.mulf %161, %160 : vector<16x256xf32>
      %cst_53 = arith.constant 5.000000e-01 : f32
      %163 = vector.broadcast %cst_53 : f32 to vector<16x256xf32>
      %164 = arith.addf %162, %163 : vector<16x256xf32>
      %165 = vector.extract_strided_slice %151 {offsets = [0, 256], sizes = [16, 256], strides = [1, 1]} : vector<16x768xf32> to vector<16x256xf32>
      %166 = vector.extract_strided_slice %154 {offsets = [0, 256], sizes = [16, 256], strides = [1, 1]} : vector<16x768xf32> to vector<16x256xf32>
      %167 = arith.addf %165, %166 : vector<16x256xf32>
      %cst_54 = arith.constant 5.000000e-01 : f32
      %168 = vector.broadcast %cst_54 : f32 to vector<16x256xf32>
      %169 = arith.mulf %168, %167 : vector<16x256xf32>
      %170 = math.tanh %169 : vector<16x256xf32>
      %cst_55 = arith.constant 5.000000e-01 : f32
      %171 = vector.broadcast %cst_55 : f32 to vector<16x256xf32>
      %172 = arith.mulf %171, %170 : vector<16x256xf32>
      %cst_56 = arith.constant 5.000000e-01 : f32
      %173 = vector.broadcast %cst_56 : f32 to vector<16x256xf32>
      %174 = arith.addf %172, %173 : vector<16x256xf32>
      %175 = vector.extract_strided_slice %151 {offsets = [0, 512], sizes = [16, 256], strides = [1, 1]} : vector<16x768xf32> to vector<16x256xf32>
      %176 = vector.extract_strided_slice %154 {offsets = [0, 512], sizes = [16, 256], strides = [1, 1]} : vector<16x768xf32> to vector<16x256xf32>
      %177 = arith.addf %176, %14 : vector<16x256xf32>
      %178 = arith.mulf %164, %177 : vector<16x256xf32>
      %179 = arith.addf %175, %178 : vector<16x256xf32>
      %180 = math.tanh %179 : vector<16x256xf32>
      %cst_57 = arith.constant 1.000000e+00 : f32
      %181 = vector.broadcast %cst_57 : f32 to vector<16x256xf32>
      %182 = arith.subf %181, %174 : vector<16x256xf32>
      %183 = arith.mulf %182, %180 : vector<16x256xf32>
      %184 = arith.mulf %174, %147 : vector<16x256xf32>
      %185 = arith.addf %183, %184 : vector<16x256xf32>
      %186 = arith.addi %0, %c3_i32 : i32
      %187 = vector.broadcast %186 : i32 to vector<16x1xi32>
      %188 = arith.cmpi sgt, %11, %187 : vector<16x1xi32>
      %189 = vector.shape_cast %188 : vector<16x1xi1> to vector<16x1xi1>
      %190 = vector.broadcast %189 : vector<16x1xi1> to vector<16x256xi1>
      %191 = arith.select %190, %185, %147 : vector<16x256xi1>, vector<16x256xf32>
      %c4_i32_58 = arith.constant 4 : i32
      %c0_59 = arith.constant 0 : index
      %c0_60 = arith.constant 0 : index
      %192 = vector.load %arg12[%c0_59, %c0_60] : memref<16x256xf32, #tpu.memory_space<vmem>>, vector<16x256xf32>
      tpu.vector_store %arg12[%c0_59, %c0_60], %191 {strides = array<i32>} : memref<16x256xf32, #tpu.memory_space<vmem>>, vector<16x256xf32>,
    } else {
    }
    %c1_i32 = arith.constant 1 : i32
    %8 = arith.cmpi eq, %arg1, %c1_i32 : i32
    %9 = arith.extui %8 : i1 to i32
    %c0_i32_2 = arith.constant 0 : i32
    %10 = arith.cmpi ne, %9, %c0_i32_2 : i32
    scf.if %10 {
      %c0_3 = arith.constant 0 : index
      %c0_4 = arith.constant 0 : index
      %11 = vector.load %arg12[%c0_3, %c0_4] : memref<16x256xf32, #tpu.memory_space<vmem>>, vector<16x256xf32>
      %12 = arith.truncf %11 : vector<16x256xf32> to vector<16x256xbf16>
      %c0_5 = arith.constant 0 : index
      %c0_6 = arith.constant 0 : index
      %13 = vector.load %arg7[%c0_5, %c0_6] : memref<256x64xbf16, #tpu.memory_space<vmem>>, vector<256x64xbf16>
      %cst = arith.constant dense<0.000000e+00> : vector<16x64xf32>
      %14 = tpu.matmul %12, %13, %cst {dimension_numbers = #tpu.dot_dimension_numbers<[1], [0], [0], [1], [0, 0, 1, 1], [], []>} : vector<16x256xbf16>, vector<256x64xbf16>, vector<16x64xf32> -> vector<16x64xf32>
      %c0_7 = arith.constant 0 : index
      %c0_8 = arith.constant 0 : index
      %15 = vector.load %arg8[%c0_7, %c0_8] : memref<1x64xf32, #tpu.memory_space<vmem>>, vector<1x64xf32>
      %16 = vector.broadcast %15 : vector<1x64xf32> to vector<16x64xf32>
      %17 = arith.addf %14, %16 : vector<16x64xf32>
      %cst_9 = arith.constant 0.000000e+00 : f32
      %18 = vector.broadcast %cst_9 : f32 to vector<16x64xf32>
      %19 = arith.maximumf %17, %18 : vector<16x64xf32>
      %20 = arith.truncf %19 : vector<16x64xf32> to vector<16x64xbf16>
      %c0_10 = arith.constant 0 : index
      %c0_11 = arith.constant 0 : index
      %21 = vector.load %arg9[%c0_10, %c0_11] : memref<64x128xbf16, #tpu.memory_space<vmem>>, vector<64x128xbf16>
      %cst_12 = arith.constant dense<0.000000e+00> : vector<16x128xf32>
      %22 = tpu.matmul %20, %21, %cst_12 {dimension_numbers = #tpu.dot_dimension_numbers<[1], [0], [0], [1], [0, 0, 1, 1], [], []>} : vector<16x64xbf16>, vector<64x128xbf16>, vector<16x128xf32> -> vector<16x128xf32>
      %c0_13 = arith.constant 0 : index
      %c0_14 = arith.constant 0 : index
      %23 = vector.load %arg10[%c0_13, %c0_14] : memref<1x128xf32, #tpu.memory_space<vmem>>, vector<1x128xf32>
      %24 = vector.broadcast %23 : vector<1x128xf32> to vector<16x128xf32>
      %25 = arith.addf %22, %24 : vector<16x128xf32>
      %26 = arith.negf %25 : vector<16x128xf32>
      %27 = math.exp %26 : vector<16x128xf32>
      %cst_15 = arith.constant 1.000000e+00 : f32
      %28 = vector.broadcast %cst_15 : f32 to vector<16x128xf32>
      %29 = arith.addf %28, %27 : vector<16x128xf32>
      %30 = arith.divf %28, %29 : vector<16x128xf32>
      %c0_16 = arith.constant 0 : index
      %c0_17 = arith.constant 0 : index
      %31 = vector.load %arg11[%c0_16, %c0_17] : memref<16x128xf32, #tpu.memory_space<vmem>>, vector<16x128xf32>
      tpu.vector_store %arg11[%c0_16, %c0_17], %30 {strides = array<i32>} : memref<16x128xf32, #tpu.memory_space<vmem>>, vector<16x128xf32>,
    } else {
    }
    return
  }
  func.func @transform_0(%arg0: i32, %arg1: i32, %arg2: memref<1xi32, #tpu.memory_space<smem>>) -> (i32, i32, i32) {
    %c0_i32 = arith.constant 0 : i32
    %c0_i32_0 = arith.constant 0 : i32
    return %arg1, %arg0, %c0_i32 : i32, i32, i32
  }
  func.func @transform_1(%arg0: i32, %arg1: i32, %arg2: memref<1xi32, #tpu.memory_space<smem>>) -> (i32, i32) {
    %c0_i32 = arith.constant 0 : i32
    %c0_i32_0 = arith.constant 0 : i32
    return %arg0, %c0_i32 : i32, i32
  }
  func.func @transform_2(%arg0: i32, %arg1: i32, %arg2: memref<1xi32, #tpu.memory_space<smem>>) -> (i32, i32) {
    %c0_i32 = arith.constant 0 : i32
    %c0_i32_0 = arith.constant 0 : i32
    %c0_i32_1 = arith.constant 0 : i32
    return %c0_i32, %c0_i32_0 : i32, i32
  }
  func.func @transform_3(%arg0: i32, %arg1: i32, %arg2: memref<1xi32, #tpu.memory_space<smem>>) -> (i32, i32) {
    %c0_i32 = arith.constant 0 : i32
    %c0_i32_0 = arith.constant 0 : i32
    %c0_i32_1 = arith.constant 0 : i32
    return %c0_i32, %c0_i32_0 : i32, i32
  }
  func.func @transform_4(%arg0: i32, %arg1: i32, %arg2: memref<1xi32, #tpu.memory_space<smem>>) -> (i32, i32) {
    %c0_i32 = arith.constant 0 : i32
    %c0_i32_0 = arith.constant 0 : i32
    %c0_i32_1 = arith.constant 0 : i32
    return %c0_i32, %c0_i32_0 : i32, i32
  }
  func.func @transform_5(%arg0: i32, %arg1: i32, %arg2: memref<1xi32, #tpu.memory_space<smem>>) -> (i32, i32) {
    %c0_i32 = arith.constant 0 : i32
    %c0_i32_0 = arith.constant 0 : i32
    %c0_i32_1 = arith.constant 0 : i32
    return %c0_i32, %c0_i32_0 : i32, i32
  }
  func.func @transform_6(%arg0: i32, %arg1: i32, %arg2: memref<1xi32, #tpu.memory_space<smem>>) -> (i32, i32) {
    %c0_i32 = arith.constant 0 : i32
    %c0_i32_0 = arith.constant 0 : i32
    %c0_i32_1 = arith.constant 0 : i32
    return %c0_i32, %c0_i32_0 : i32, i32
  }
  func.func @transform_7(%arg0: i32, %arg1: i32, %arg2: memref<1xi32, #tpu.memory_space<smem>>) -> (i32, i32) {
    %c0_i32 = arith.constant 0 : i32
    %c0_i32_0 = arith.constant 0 : i32
    %c0_i32_1 = arith.constant 0 : i32
    return %c0_i32, %c0_i32_0 : i32, i32
  }
  func.func @transform_8(%arg0: i32, %arg1: i32, %arg2: memref<1xi32, #tpu.memory_space<smem>>) -> (i32, i32) {
    %c0_i32 = arith.constant 0 : i32
    %c0_i32_0 = arith.constant 0 : i32
    return %arg0, %c0_i32 : i32, i32
  }
}

</mosaic_0001>

<llo_original>
// kernel: tpu_custom_call.1
$region0: #{tpu_custom_call.1}
  #allocation0 [shape = 'u32[]', space=smem, size = 0x4, offset = 0x4, fixed_abs, tag = 'smem constant byte address 0x4 - core index']
  #allocation1 [shape = 'u32[144,128]{1,0:T(1,128)}', space=vmem, size = 0x12000, scoped, tag = 'internal scratch']
  #allocation2 [shape = 'f32[16,256]{1,0:T(8,128)}', space=vmem, size = 0x4000, scoped, tag = 'scratch operand']
  #allocation3 [shape = 's32[1]{0}', space=sflag, size = 0x4, scoped, tag = 'scoped memory for tpu_custom_call.1']
  #allocation4 [shape = 's32[1]{0:T(128)S(6)}', space=smem, size = 0x200, scoped, tag = 'prefetched SMEM operand 0']
  %s0 = inlined_call_operand.<no memory space> [shape: s32[1], index: 0, kind: input, shape index: {}]
  %s1 = inlined_call_operand.hbm [shape: bf16[8,16,768], index: 1, kind: input, shape index: {}]
  %s2 = inlined_call_operand.vmem [shape: s32[16,1], index: 2, kind: input, shape index: {}]
  %s3 = inlined_call_operand.hbm [shape: bf16[256,768], index: 3, kind: input, shape index: {}]
  %s4 = inlined_call_operand.vmem [shape: f32[1,256], index: 4, kind: input, shape index: {}]
  %s5 = inlined_call_operand.vmem [shape: bf16[256,64], index: 5, kind: input, shape index: {}]
  %s6 = inlined_call_operand.vmem [shape: f32[1,64], index: 6, kind: input, shape index: {}]
  %s7 = inlined_call_operand.vmem [shape: bf16[64,128], index: 7, kind: input, shape index: {}]
  %s8 = inlined_call_operand.vmem [shape: f32[1,128], index: 8, kind: input, shape index: {}]
  %s9 = inlined_call_operand.hbm [shape: f32[16,128], index: 9, kind: output, shape index: {}]
  %s10 = sld [smem:[#allocation0]]
  $region85: #{tpu_custom_call.1} parent=0
    _
  %s12 = ssub.s32 1, %s10
  %s13 = scalar_select 0, %s12, %s10
  %14 = sst [smem:[#allocation4]] %s0
  $region1: #{tpu_custom_call.1} parent=0
    #allocation5 [shape = 'u8[196608]{0}', space=vmem, size = 0x30000, scoped, tag = 'input window, operand 1']
    #allocation6 [shape = 's32[2]{0}', space=sflag, size = 0x8, scoped, tag = 'scoped memory for tpu_custom_call.1']
    #allocation7 [shape = 's32[2]{0}', space=sflag, size = 0x8, scoped, tag = 'scoped memory for tpu_custom_call.1']
    #allocation8 [shape = 'u8[393216]{0}', space=vmem, size = 0x60000, scoped, tag = 'input window, operand 3, single buffered']
    #allocation9 [shape = 's32[1]{0}', space=sflag, size = 0x4, scoped, tag = 'scoped memory for tpu_custom_call.1']
    #allocation10 [shape = 'u8[8192]{0}', space=vmem, size = 0x2000, scoped, tag = 'output window, operand 0, single buffered']
    %15 = vsyncpa [#allocation6], 0
    %s16 = scalar_lea.sflag [#allocation6], 1
    %17 = vsyncpa %s16, 0
    %18 = vsyncpa [#allocation9], 0
    %19 = vsyncpa [#allocation7], 0
    loop: start=0, step=1, limit=4
    $region2: #{tpu_custom_call.1} parent=1 // loop_pre_header
      _
    $region3: #{tpu_custom_call.1} parent=1 // loop_header
      %s21 = sphi 0, %s25
      %p22 = scmp.ge.s32.totalorder %s21, 4
      %s28 = sphi 0, %s40
      %s29 = sphi 0, %s36
      %s30 = sphi 0, %s28
      %s31 = sphi 0, %s29
      %s32 = sphi 0, %s30
      %s33 = sphi 0, %s31
      %s45 = sphi 0, %s47
      %s48 = sphi 0, %s45
      %s49 = sphi 0, %s48
      %s65 = sphi 0, %s49
      %s71 = sphi 0, %s73
      %s74 = sphi 0, %s71
      %s75 = sphi 0, %s74
      %s91 = sphi 0, %s75
      %s95 = sphi 0, %s95
      %s97 = sphi 0, %s95
      %s98 = sphi 0, %s97
      %s112 = sphi 0, %s98
      %s116 = sphi 0, %s116
      %s118 = sphi 0, %s116
      %s119 = sphi 0, %s118
      %s133 = sphi 0, %s119
      %s137 = sphi 0, %s137
      %s139 = sphi 0, %s137
      %s140 = sphi 0, %s139
      %s154 = sphi 0, %s140
      %s158 = sphi 0, %s158
      %s160 = sphi 0, %s158
      %s161 = sphi 0, %s160
      %s175 = sphi 0, %s161
      %s179 = sphi 0, %s179
      %s181 = sphi 0, %s179
      %s182 = sphi 0, %s181
      %s196 = sphi 0, %s182
      %s200 = sphi 0, %s200
      %s202 = sphi 0, %s200
      %s203 = sphi 0, %s202
      %s217 = sphi 0, %s203
      %s223 = sphi 0, %s225
      %s226 = sphi 0, %s223
      %s227 = sphi 0, %s226
      %s243 = sphi 0, %s227
    $region4: #{tpu_custom_call.1} parent=1 // loop_header_branch
      %24 = sbr.rel (%p22) target = $region8
    $region5: #{tpu_custom_call.1} parent=1 // loop_body
      %s26 = ssub.s32 %s21, 1
      %s27 = ssub.s32 %s21, 2
      %s34 = sadd.s32 1, %s29
      %p35 = scmp.ge.s32.totalorder %s34, 2
      %s36 = scalar_select %p35, 0, %s34
      %s37 = sadd.s32 1, %s28
      %s38 = scalar_select %p35, %s37, %s28
      %p39 = scmp.ge.s32.totalorder %s38, 1
      %s40 = scalar_select %p39, 0, %s38
      %s41 = ssub.s32 %s29, %s36
      %s42 = ssub.s32 %s28, %s40
      %s43 = sor.u32 %s41, %s42
      %p44 = scmp.eq.s32.totalorder %s43, 0
      %s46 = sadd.s32 %s45, 1
      %s47 = scalar_select %p44, %s45, %s46
      %p50 = pneg %p44
      %p51 = scmp.eq.s32.totalorder %s21, 1
      %p52 = por %p50, %p51
      %p53 = scmp.ne.s32.totalorder %s45, %s48
      %p54 = scmp.eq.s32.totalorder %s21, 0
      %p55 = por %p53, %p54
      %p56 = scmp.ne.s32.totalorder %s45, %s48
      %p57 = scmp.eq.s32.totalorder %s26, 1
      %p58 = por %p56, %p57
      %p59 = scmp.ne.s32.totalorder %s48, %s49
      %p60 = scmp.eq.s32.totalorder %s26, 0
      %p61 = por %p59, %p60
      %p62 = scmp.ne.s32.totalorder %s48, %s49
      %p63 = scmp.eq.s32.totalorder %s27, 1
      %p64 = por %p62, %p63
      %p66 = scmp.ne.s32.totalorder %s49, %s65
      %p67 = scmp.eq.s32.totalorder %s27, 0
      %p68 = por %p66, %p67
      %s69 = ssub.s32 %s28, %s40
      %p70 = scmp.eq.s32.totalorder %s69, 0
      %s72 = sadd.s32 %s71, 1
      %s73 = scalar_select %p70, %s71, %s72
      %p76 = pneg %p70
      %p77 = scmp.eq.s32.totalorder %s21, 1
      %p78 = por %p76, %p77
      %p79 = scmp.ne.s32.totalorder %s71, %s74
      %p80 = scmp.eq.s32.totalorder %s21, 0
      %p81 = por %p79, %p80
      %p82 = scmp.ne.s32.totalorder %s71, %s74
      %p83 = scmp.eq.s32.totalorder %s26, 1
      %p84 = por %p82, %p83
      %p85 = scmp.ne.s32.totalorder %s74, %s75
      %p86 = scmp.eq.s32.totalorder %s26, 0
      %p87 = por %p85, %p86
      %p88 = scmp.ne.s32.totalorder %s74, %s75
      %p89 = scmp.eq.s32.totalorder %s27, 1
      %p90 = por %p88, %p89
      %p92 = scmp.ne.s32.totalorder %s75, %s91
      %p93 = scmp.eq.s32.totalorder %s27, 0
      %p94 = por %p92, %p93
      %s96 = sadd.s32 %s95, 1
      %p99 = scmp.eq.s32.totalorder %s21, 1
      %p100 = scmp.ne.s32.totalorder %s95, %s97
      %p101 = scmp.eq.s32.totalorder %s21, 0
      %p102 = por %p100, %p101
      %p103 = scmp.ne.s32.totalorder %s95, %s97
      %p104 = scmp.eq.s32.totalorder %s26, 1
      %p105 = por %p103, %p104
      %p106 = scmp.ne.s32.totalorder %s97, %s98
      %p107 = scmp.eq.s32.totalorder %s26, 0
      %p108 = por %p106, %p107
      %p109 = scmp.ne.s32.totalorder %s97, %s98
      %p110 = scmp.eq.s32.totalorder %s27, 1
      %p111 = por %p109, %p110
      %p113 = scmp.ne.s32.totalorder %s98, %s112
      %p114 = scmp.eq.s32.totalorder %s27, 0
      %p115 = por %p113, %p114
      %s117 = sadd.s32 %s116, 1
      %p120 = scmp.eq.s32.totalorder %s21, 1
      %p121 = scmp.ne.s32.totalorder %s116, %s118
      %p122 = scmp.eq.s32.totalorder %s21, 0
      %p123 = por %p121, %p122
      %p124 = scmp.ne.s32.totalorder %s116, %s118
      %p125 = scmp.eq.s32.totalorder %s26, 1
      %p126 = por %p124, %p125
      %p127 = scmp.ne.s32.totalorder %s118, %s119
      %p128 = scmp.eq.s32.totalorder %s26, 0
      %p129 = por %p127, %p128
      %p130 = scmp.ne.s32.totalorder %s118, %s119
      %p131 = scmp.eq.s32.totalorder %s27, 1
      %p132 = por %p130, %p131
      %p134 = scmp.ne.s32.totalorder %s119, %s133
      %p135 = scmp.eq.s32.totalorder %s27, 0
      %p136 = por %p134, %p135
      %s138 = sadd.s32 %s137, 1
      %p141 = scmp.eq.s32.totalorder %s21, 1
      %p142 = scmp.ne.s32.totalorder %s137, %s139
      %p143 = scmp.eq.s32.totalorder %s21, 0
      %p144 = por %p142, %p143
      %p145 = scmp.ne.s32.totalorder %s137, %s139
      %p146 = scmp.eq.s32.totalorder %s26, 1
      %p147 = por %p145, %p146
      %p148 = scmp.ne.s32.totalorder %s139, %s140
      %p149 = scmp.eq.s32.totalorder %s26, 0
      %p150 = por %p148, %p149
      %p151 = scmp.ne.s32.totalorder %s139, %s140
      %p152 = scmp.eq.s32.totalorder %s27, 1
      %p153 = por %p151, %p152
      %p155 = scmp.ne.s32.totalorder %s140, %s154
      %p156 = scmp.eq.s32.totalorder %s27, 0
      %p157 = por %p155, %p156
      %s159 = sadd.s32 %s158, 1
      %p162 = scmp.eq.s32.totalorder %s21, 1
      %p163 = scmp.ne.s32.totalorder %s158, %s160
      %p164 = scmp.eq.s32.totalorder %s21, 0
      %p165 = por %p163, %p164
      %p166 = scmp.ne.s32.totalorder %s158, %s160
      %p167 = scmp.eq.s32.totalorder %s26, 1
      %p168 = por %p166, %p167
      %p169 = scmp.ne.s32.totalorder %s160, %s161
      %p170 = scmp.eq.s32.totalorder %s26, 0
      %p171 = por %p169, %p170
      %p172 = scmp.ne.s32.totalorder %s160, %s161
      %p173 = scmp.eq.s32.totalorder %s27, 1
      %p174 = por %p172, %p173
      %p176 = scmp.ne.s32.totalorder %s161, %s175
      %p177 = scmp.eq.s32.totalorder %s27, 0
      %p178 = por %p176, %p177
      %s180 = sadd.s32 %s179, 1
      %p183 = scmp.eq.s32.totalorder %s21, 1
      %p184 = scmp.ne.s32.totalorder %s179, %s181
      %p185 = scmp.eq.s32.totalorder %s21, 0
      %p186 = por %p184, %p185
      %p187 = scmp.ne.s32.totalorder %s179, %s181
      %p188 = scmp.eq.s32.totalorder %s26, 1
      %p189 = por %p187, %p188
      %p190 = scmp.ne.s32.totalorder %s181, %s182
      %p191 = scmp.eq.s32.totalorder %s26, 0
      %p192 = por %p190, %p191
      %p193 = scmp.ne.s32.totalorder %s181, %s182
      %p194 = scmp.eq.s32.totalorder %s27, 1
      %p195 = por %p193, %p194
      %p197 = scmp.ne.s32.totalorder %s182, %s196
      %p198 = scmp.eq.s32.totalorder %s27, 0
      %p199 = por %p197, %p198
      %s201 = sadd.s32 %s200, 1
      %p204 = scmp.eq.s32.totalorder %s21, 1
      %p205 = scmp.ne.s32.totalorder %s200, %s202
      %p206 = scmp.eq.s32.totalorder %s21, 0
      %p207 = por %p205, %p206
      %p208 = scmp.ne.s32.totalorder %s200, %s202
      %p209 = scmp.eq.s32.totalorder %s26, 1
      %p210 = por %p208, %p209
      %p211 = scmp.ne.s32.totalorder %s202, %s203
      %p212 = scmp.eq.s32.totalorder %s26, 0
      %p213 = por %p211, %p212
      %p214 = scmp.ne.s32.totalorder %s202, %s203
      %p215 = scmp.eq.s32.totalorder %s27, 1
      %p216 = por %p214, %p215
      %p218 = scmp.ne.s32.totalorder %s203, %s217
      %p219 = scmp.eq.s32.totalorder %s27, 0
      %p220 = por %p218, %p219
      %s221 = ssub.s32 %s28, %s40
      %p222 = scmp.eq.s32.totalorder %s221, 0
      %s224 = sadd.s32 %s223, 1
      %s225 = scalar_select %p222, %s223, %s224
      %p228 = pneg %p222
      %p229 = scmp.eq.s32.totalorder %s21, 1
      %p230 = por %p228, %p229
      %p231 = scmp.ne.s32.totalorder %s223, %s226
      %p232 = scmp.eq.s32.totalorder %s21, 0
      %p233 = por %p231, %p232
      %p234 = scmp.ne.s32.totalorder %s223, %s226
      %p235 = scmp.eq.s32.totalorder %s26, 1
      %p236 = por %p234, %p235
      %p237 = scmp.ne.s32.totalorder %s226, %s227
      %p238 = scmp.eq.s32.totalorder %s26, 0
      %p239 = por %p237, %p238
      %p240 = scmp.ne.s32.totalorder %s226, %s227
      %p241 = scmp.eq.s32.totalorder %s27, 1
      %p242 = por %p240, %p241
      %p244 = scmp.ne.s32.totalorder %s227, %s243
      %p245 = scmp.eq.s32.totalorder %s27, 0
      %p246 = por %p244, %p245
      %p247 = scmp.le.s32.totalorder 1, %s21
      %p248 = scmp.lt.s32.totalorder %s21, 3
      %p249 = pnand %p247, %p248
      %p250 = pneg %p249
      // Predicated region
      $region9: #{tpu_custom_call.1} parent=5 // pred_check
        _
      $region10: #{tpu_custom_call.1} parent=5 // pred_check_branch
        %252 = sbr.rel (%p249) target = $region12
      $region11: #{tpu_custom_call.1} parent=5 // pred_region
        %s253 = ssub.s32 %s21, 1
        // Predicated region
        $region13: #{tpu_custom_call.1} parent=11 // pred_check
          %p254 = pneg %p87
        $region14: #{tpu_custom_call.1} parent=11 // pred_check_branch
          %256 = sbr.rel (%p254) target = $region16
        $region15: #{tpu_custom_call.1} parent=11 // pred_region
          %s257 = smul.u32 2, %s30
          %p258 = scmp.lt.s32.totalorder %s257, 1
          %s259 = scalar_select %p258, %s257, 1
          %s260 = smul.addr %s259, 8
          %s261 = scalar_lea.vmem %s2, %s260
          %s262 = smul.u32 2, %s30
        $region16: #{tpu_custom_call.1} parent=11 // pred_fallthru
          _
        // Predicated region
        $region17: #{tpu_custom_call.1} parent=11 // pred_check
          %p263 = pneg %p108
        $region18: #{tpu_custom_call.1} parent=11 // pred_check_branch
          %265 = sbr.rel (%p263) target = $region20
        $region19: #{tpu_custom_call.1} parent=11 // pred_region
          %s267 = ssub.s32 12288, 12288
          %268 = vsyncadd [#allocation9], %s267
          %s269 = sshll.u32 [#allocation8], 4
          %s270 = int_to_ptr.vmem [resolvable:$true] %s269
          %275 = dma.hbm_to_vmem [thread:$0]  %s3, 12288, %s270, [#allocation9], 384, 384, 24
        $region20: #{tpu_custom_call.1} parent=11 // pred_fallthru
          _
        // Predicated region
        $region21: #{tpu_custom_call.1} parent=11 // pred_check
          %p276 = pneg %p129
        $region22: #{tpu_custom_call.1} parent=11 // pred_check_branch
          %278 = sbr.rel (%p276) target = $region24
        $region23: #{tpu_custom_call.1} parent=11 // pred_region
          _
        $region24: #{tpu_custom_call.1} parent=11 // pred_fallthru
          _
        // Predicated region
        $region25: #{tpu_custom_call.1} parent=11 // pred_check
          %p279 = pneg %p150
        $region26: #{tpu_custom_call.1} parent=11 // pred_check_branch
          %281 = sbr.rel (%p279) target = $region28
        $region27: #{tpu_custom_call.1} parent=11 // pred_region
          _
        $region28: #{tpu_custom_call.1} parent=11 // pred_fallthru
          _
        // Predicated region
        $region29: #{tpu_custom_call.1} parent=11 // pred_check
          %p282 = pneg %p171
        $region30: #{tpu_custom_call.1} parent=11 // pred_check_branch
          %284 = sbr.rel (%p282) target = $region32
        $region31: #{tpu_custom_call.1} parent=11 // pred_region
          _
        $region32: #{tpu_custom_call.1} parent=11 // pred_fallthru
          _
        // Predicated region
        $region33: #{tpu_custom_call.1} parent=11 // pred_check
          %p285 = pneg %p192
        $region34: #{tpu_custom_call.1} parent=11 // pred_check_branch
          %287 = sbr.rel (%p285) target = $region36
        $region35: #{tpu_custom_call.1} parent=11 // pred_region
          _
        $region36: #{tpu_custom_call.1} parent=11 // pred_fallthru
          _
        // Predicated region
        $region37: #{tpu_custom_call.1} parent=11 // pred_check
          %p288 = pneg %p213
        $region38: #{tpu_custom_call.1} parent=11 // pred_check_branch
          %290 = sbr.rel (%p288) target = $region40
        $region39: #{tpu_custom_call.1} parent=11 // pred_region
          _
        $region40: #{tpu_custom_call.1} parent=11 // pred_fallthru
          _
      $region12: #{tpu_custom_call.1} parent=5 // pred_fallthru
        _
      %p291 = scmp.lt.s32.totalorder %s21, 2
      // Predicated region
      $region41: #{tpu_custom_call.1} parent=5 // pred_check
        %p292 = pneg %p291
      $region42: #{tpu_custom_call.1} parent=5 // pred_check_branch
        %294 = sbr.rel (%p292) target = $region44
      $region43: #{tpu_custom_call.1} parent=5 // pred_region
        // Predicated region
        $region45: #{tpu_custom_call.1} parent=43 // pred_check
          %p295 = pneg %p55
        $region46: #{tpu_custom_call.1} parent=43 // pred_check_branch
          %297 = sbr.rel (%p295) target = $region48
        $region47: #{tpu_custom_call.1} parent=43 // pred_region
          %s298 = sand.u32 %s45, 1
          %s299 = scalar_lea.sflag [#allocation6], %s298
          %s300 = sand.u32 %s45, 1
          %s301 = smul.addr %s300, 192
          %s302 = scalar_lea.vmem [#allocation5], %s301
          %s303 = smul.u32 4, %s29
          %s304 = smul.u32 2, %s28
          %s306 = ssub.s32 3072, 3072
          %307 = vsyncadd %s299, %s306
          %s308 = smul.addr %s304, 6
          %s309 = smul.addr %s303, 12
          %s310 = sadd.s32 %s308, %s309
          %s311 = smul.addr %s310, 64
          %s312 = scalar_lea.hbm %s1, %s311
          %s313 = sshll.u32 %s302, 4
          %s314 = int_to_ptr.vmem [resolvable:$true] %s313
          %319 = dma.hbm_to_vmem [thread:$0]  %s312, 3072, %s314, %s299, 384, 384, 24
        $region48: #{tpu_custom_call.1} parent=43 // pred_fallthru
          _
      $region44: #{tpu_custom_call.1} parent=5 // pred_fallthru
        _
      %p320 = scmp.le.s32.totalorder 1, %s21
      %p321 = scmp.lt.s32.totalorder %s21, 3
      %p322 = pnand %p320, %p321
      %p323 = pneg %p322
      // Predicated region
      $region49: #{tpu_custom_call.1} parent=5 // pred_check
        _
      $region50: #{tpu_custom_call.1} parent=5 // pred_check_branch
        %325 = sbr.rel (%p322) target = $region52
      $region51: #{tpu_custom_call.1} parent=5 // pred_region
        %s326 = ssub.s32 %s21, 1
        %s327 = sand.u32 %s48, 1
        %s328 = scalar_lea.sflag [#allocation6], %s327
        %s329 = sand.u32 %s48, 1
        %s330 = smul.addr %s329, 192
        %s331 = scalar_lea.vmem [#allocation5], %s330
        // Predicated region
        $region53: #{tpu_custom_call.1} parent=51 // pred_check
          %p332 = pneg %p61
        $region54: #{tpu_custom_call.1} parent=51 // pred_check_branch
          %334 = sbr.rel (%p332) target = $region56
        $region55: #{tpu_custom_call.1} parent=51 // pred_region
          %335 = dma.done %s328, 3072
        $region56: #{tpu_custom_call.1} parent=51 // pred_fallthru
          _
        // Predicated region
        $region57: #{tpu_custom_call.1} parent=51 // pred_check
          %p336 = pneg %p108
        $region58: #{tpu_custom_call.1} parent=51 // pred_check_branch
          %338 = sbr.rel (%p336) target = $region60
        $region59: #{tpu_custom_call.1} parent=51 // pred_region
          %339 = dma.done [#allocation9], 12288
        $region60: #{tpu_custom_call.1} parent=51 // pred_fallthru
          _
        %s340 = sand.u32 %s48, 1
        %s341 = scalar_lea.sflag [#allocation6], %s340
        %s342 = sand.u32 %s48, 1
        %s343 = smul.addr %s342, 192
        %s344 = scalar_lea.vmem [#allocation5], %s343
        %p345 = pneg %p61
        %p346 = pneg %p58
        %s347 = smul.u32 2, %s30
        %p348 = scmp.lt.s32.totalorder %s347, 1
        %s349 = scalar_select %p348, %s347, 1
        %s350 = smul.addr %s349, 8
        %s351 = scalar_lea.vmem %s2, %s350
        %p352 = pneg %p87
        %p353 = pneg %p84
        %p354 = pneg %p108
        %p355 = pneg %p105
        %p356 = pneg %p129
        %p357 = pneg %p126
        %p358 = pneg %p150
        %p359 = pneg %p147
        %p360 = pneg %p171
        %p361 = pneg %p168
        %p362 = pneg %p192
        %p363 = pneg %p189
        %p364 = pneg %p213
        %p365 = pneg %p210
        %p366 = pneg %p239
        %p367 = pneg %p236
        %s368 = smul.u32 4, %s31
        %s369 = smul.u32 2, %s30
        %s370 = smul.u32 2, %s30
        %p371 = scmp.lt.s32.totalorder %s370, 1
        %s372 = scalar_select %p371, %s370, 1
        %s373 = smul.addr %s372, 8
        %s374 = scalar_lea.vmem %s2, %s373
        %s375 = smul.u32 2, %s30
        %s376 = smul.u32 2, %s30
        %s378 = smul.u32 %s31, 4
        %p379 = scmp.eq.s32.totalorder %s31, 0
        // Predicated region
        $region61: #{tpu_custom_call.1} parent=51 // pred_check
          %p380 = pneg %p379
        $region62: #{tpu_custom_call.1} parent=51 // pred_check_branch
          %382 = sbr.rel (%p380) target = $region64
        $region63: #{tpu_custom_call.1} parent=51 // pred_region
          %383 = vst [vmem:[#allocation2] sm:$0xff] 0.0
          %384 = vst [vmem:[#allocation2 + $0x8] sm:$0xff] 0.0
          %385 = vst [vmem:[#allocation2 + $0x10] sm:$0xff] 0.0
          %386 = vst [vmem:[#allocation2 + $0x18] sm:$0xff] 0.0
        $region64: #{tpu_custom_call.1} parent=51 // pred_fallthru
          _
        %s387 = sld [smem:[#allocation4]]
        %p388 = scmp.lt.s32.totalorder %s378, %s387
        // Predicated region
        $region65: #{tpu_custom_call.1} parent=51 // pred_check
          %p389 = pneg %p388
        $region66: #{tpu_custom_call.1} parent=51 // pred_check_branch
          %391 = sbr.rel (%p389) target = $region68
        $region67: #{tpu_custom_call.1} parent=51 // pred_region
          %v392 = vld [vmem:[%s374] sm:$0xff]
          %v393 = vld [vmem:[%s374 + $0x8] sm:$0xff]
          %v394 = vld [vmem:[%s4] sm:$0x3]
          %v396 = vlaneseq
          %v397 = vshrl.u32 %v396, 7
          %v398 = vsub.s32 0, %v397
          %v399 = vrot.slane %v394, %v398
          %v400 = vlaneseq
          %v401 = vshrl.u32 %v400, 7
          %v402 = vsub.s32 1, %v401
          %v403 = vrot.slane %v394, %v402
          %v406 = vld [vmem:[#allocation2] sm:$0xff]
          %v407 = vld [vmem:[#allocation2 + $0x8] sm:$0xff]
          %v408 = vld [vmem:[#allocation2 + $0x10] sm:$0xff]
          %v409 = vld [vmem:[#allocation2 + $0x18] sm:$0xff]
          %v410 = vld [vmem:[%s331] sm:$0xff]
          %v411 = vld [vmem:[%s331 + $0x8] sm:$0xff]
          %v412 = vld [vmem:[%s331 + $0x10] sm:$0xff]
          %v413 = vld [vmem:[%s331 + $0x18] sm:$0xff]
          %v414 = vld [vmem:[%s331 + $0x20] sm:$0xff]
          %v415 = vld [vmem:[%s331 + $0x28] sm:$0xff]
          %v416 = vunpack.c.l.bf16 %v410
          %v417 = vunpack.c.h.bf16 %v410
          %v418 = vunpack.c.l.bf16 %v411
          %v419 = vunpack.c.h.bf16 %v411
          %v420 = vunpack.c.l.bf16 %v412
          %v421 = vunpack.c.h.bf16 %v412
          %v422 = vunpack.c.l.bf16 %v413
          %v423 = vunpack.c.h.bf16 %v413
          %v424 = vunpack.c.l.bf16 %v414
          %v425 = vunpack.c.h.bf16 %v414
          %v426 = vunpack.c.l.bf16 %v415
          %v427 = vunpack.c.h.bf16 %v415
          %v428 = vpack.c.bf16 %v408, %v406
          %v429 = vpack.c.bf16 %v409, %v407
          %v430 = vld [vmem:[#allocation8] sm:$0xff]
          %v431 = vld [vmem:[#allocation8 + $0x8] sm:$0xff]
          %v432 = vld [vmem:[#allocation8 + $0x10] sm:$0xff]
          %v433 = vld [vmem:[#allocation8 + $0x18] sm:$0xff]
          %v434 = vld [vmem:[#allocation8 + $0x20] sm:$0xff]
          %v435 = vld [vmem:[#allocation8 + $0x28] sm:$0xff]
          %v436 = vld [vmem:[#allocation8 + $0x30] sm:$0xff]
          %v437 = vld [vmem:[#allocation8 + $0x38] sm:$0xff]
          %v438 = vld [vmem:[#allocation8 + $0x40] sm:$0xff]
          %v439 = vld [vmem:[#allocation8 + $0x48] sm:$0xff]
          %v440 = vld [vmem:[#allocation8 + $0x50] sm:$0xff]
          %v441 = vld [vmem:[#allocation8 + $0x58] sm:$0xff]
          %v442 = vld [vmem:[#allocation8 + $0x60] sm:$0xff]
          %v443 = vld [vmem:[#allocation8 + $0x68] sm:$0xff]
          %v444 = vld [vmem:[#allocation8 + $0x70] sm:$0xff]
          %v445 = vld [vmem:[#allocation8 + $0x78] sm:$0xff]
          %v446 = vld [vmem:[#allocation8 + $0x80] sm:$0xff]
          %v447 = vld [vmem:[#allocation8 + $0x88] sm:$0xff]
          %v448 = vld [vmem:[#allocation8 + $0x90] sm:$0xff]
          %v449 = vld [vmem:[#allocation8 + $0x98] sm:$0xff]
          %v450 = vld [vmem:[#allocation8 + $0xa0] sm:$0xff]
          %v451 = vld [vmem:[#allocation8 + $0xa8] sm:$0xff]
          %v452 = vld [vmem:[#allocation8 + $0xb0] sm:$0xff]
          %v453 = vld [vmem:[#allocation8 + $0xb8] sm:$0xff]
          %v454 = vld [vmem:[#allocation8 + $0xc0] sm:$0xff]
          %v455 = vld [vmem:[#allocation8 + $0xc8] sm:$0xff]
          %v456 = vld [vmem:[#allocation8 + $0xd0] sm:$0xff]
          %v457 = vld [vmem:[#allocation8 + $0xd8] sm:$0xff]
          %v458 = vld [vmem:[#allocation8 + $0xe0] sm:$0xff]
          %v459 = vld [vmem:[#allocation8 + $0xe8] sm:$0xff]
          %v460 = vld [vmem:[#allocation8 + $0xf0] sm:$0xff]
          %v461 = vld [vmem:[#allocation8 + $0xf8] sm:$0xff]
          %v462 = vld [vmem:[#allocation8 + $0x100] sm:$0xff]
          %v463 = vld [vmem:[#allocation8 + $0x108] sm:$0xff]
          %v464 = vld [vmem:[#allocation8 + $0x110] sm:$0xff]
          %v465 = vld [vmem:[#allocation8 + $0x118] sm:$0xff]
          %v466 = vld [vmem:[#allocation8 + $0x120] sm:$0xff]
          %v467 = vld [vmem:[#allocation8 + $0x128] sm:$0xff]
          %v468 = vld [vmem:[#allocation8 + $0x130] sm:$0xff]
          %v469 = vld [vmem:[#allocation8 + $0x138] sm:$0xff]
          %v470 = vld [vmem:[#allocation8 + $0x140] sm:$0xff]
          %v471 = vld [vmem:[#allocation8 + $0x148] sm:$0xff]
          %v472 = vld [vmem:[#allocation8 + $0x150] sm:$0xff]
          %v473 = vld [vmem:[#allocation8 + $0x158] sm:$0xff]
          %v474 = vld [vmem:[#allocation8 + $0x160] sm:$0xff]
          %v475 = vld [vmem:[#allocation8 + $0x168] sm:$0xff]
          %v476 = vld [vmem:[#allocation8 + $0x170] sm:$0xff]
          %v477 = vld [vmem:[#allocation8 + $0x178] sm:$0xff]
          %v478 = vld [vmem:[#allocation8 + $0x180] sm:$0xff]
          %v479 = vld [vmem:[#allocation8 + $0x188] sm:$0xff]
          %v480 = vld [vmem:[#allocation8 + $0x190] sm:$0xff]
          %v481 = vld [vmem:[#allocation8 + $0x198] sm:$0xff]
          %v482 = vld [vmem:[#allocation8 + $0x1a0] sm:$0xff]
          %v483 = vld [vmem:[#allocation8 + $0x1a8] sm:$0xff]
          %v484 = vld [vmem:[#allocation8 + $0x1b0] sm:$0xff]
          %v485 = vld [vmem:[#allocation8 + $0x1b8] sm:$0xff]
          %v486 = vld [vmem:[#allocation8 + $0x1c0] sm:$0xff]
          %v487 = vld [vmem:[#allocation8 + $0x1c8] sm:$0xff]
          %v488 = vld [vmem:[#allocation8 + $0x1d0] sm:$0xff]
          %v489 = vld [vmem:[#allocation8 + $0x1d8] sm:$0xff]
          %v490 = vld [vmem:[#allocation8 + $0x1e0] sm:$0xff]
          %v491 = vld [vmem:[#allocation8 + $0x1e8] sm:$0xff]
          %v492 = vld [vmem:[#allocation8 + $0x1f0] sm:$0xff]
          %v493 = vld [vmem:[#allocation8 + $0x1f8] sm:$0xff]
          %v494 = vld [vmem:[#allocation8 + $0x200] sm:$0xff]
          %v495 = vld [vmem:[#allocation8 + $0x208] sm:$0xff]
          %v496 = vld [vmem:[#allocation8 + $0x210] sm:$0xff]
          %v497 = vld [vmem:[#allocation8 + $0x218] sm:$0xff]
          %v498 = vld [vmem:[#allocation8 + $0x220] sm:$0xff]
          %v499 = vld [vmem:[#allocation8 + $0x228] sm:$0xff]
          %v500 = vld [vmem:[#allocation8 + $0x230] sm:$0xff]
          %v501 = vld [vmem:[#allocation8 + $0x238] sm:$0xff]
          %v502 = vld [vmem:[#allocation8 + $0x240] sm:$0xff]
          %v503 = vld [vmem:[#allocation8 + $0x248] sm:$0xff]
          %v504 = vld [vmem:[#allocation8 + $0x250] sm:$0xff]
          %v505 = vld [vmem:[#allocation8 + $0x258] sm:$0xff]
          %v506 = vld [vmem:[#allocation8 + $0x260] sm:$0xff]
          %v507 = vld [vmem:[#allocation8 + $0x268] sm:$0xff]
          %v508 = vld [vmem:[#allocation8 + $0x270] sm:$0xff]
          %v509 = vld [vmem:[#allocation8 + $0x278] sm:$0xff]
          %v510 = vld [vmem:[#allocation8 + $0x280] sm:$0xff]
          %v511 = vld [vmem:[#allocation8 + $0x288] sm:$0xff]
          %v512 = vld [vmem:[#allocation8 + $0x290] sm:$0xff]
          %v513 = vld [vmem:[#allocation8 + $0x298] sm:$0xff]
          %v514 = vld [vmem:[#allocation8 + $0x2a0] sm:$0xff]
          %v515 = vld [vmem:[#allocation8 + $0x2a8] sm:$0xff]
          %v516 = vld [vmem:[#allocation8 + $0x2b0] sm:$0xff]
          %v517 = vld [vmem:[#allocation8 + $0x2b8] sm:$0xff]
          %v518 = vld [vmem:[#allocation8 + $0x2c0] sm:$0xff]
          %v519 = vld [vmem:[#allocation8 + $0x2c8] sm:$0xff]
          %v520 = vld [vmem:[#allocation8 + $0x2d0] sm:$0xff]
          %v521 = vld [vmem:[#allocation8 + $0x2d8] sm:$0xff]
          %v522 = vld [vmem:[#allocation8 + $0x2e0] sm:$0xff]
          %v523 = vld [vmem:[#allocation8 + $0x2e8] sm:$0xff]
          %v524 = vld [vmem:[#allocation8 + $0x2f0] sm:$0xff]
          %v525 = vld [vmem:[#allocation8 + $0x2f8] sm:$0xff]
          %v622 = vunpack.c.l.b16 %v430
          %v623 = vunpack.c.h.b16 %v430
          %v624 = vunpack.c.l.b16 %v431
          %v625 = vunpack.c.h.b16 %v431
          %v626 = vunpack.c.l.b16 %v432
          %v627 = vunpack.c.h.b16 %v432
          %v628 = vunpack.c.l.b16 %v433
          %v629 = vunpack.c.h.b16 %v433
          %v630 = vunpack.c.l.b16 %v434
          %v631 = vunpack.c.h.b16 %v434
          %v632 = vunpack.c.l.b16 %v435
          %v633 = vunpack.c.h.b16 %v435
          %v634 = vunpack.c.l.b16 %v436
          %v635 = vunpack.c.h.b16 %v436
          %v636 = vunpack.c.l.b16 %v437
          %v637 = vunpack.c.h.b16 %v437
          %v638 = vunpack.c.l.b16 %v438
          %v639 = vunpack.c.h.b16 %v438
          %v640 = vunpack.c.l.b16 %v439
          %v641 = vunpack.c.h.b16 %v439
          %v642 = vunpack.c.l.b16 %v440
          %v643 = vunpack.c.h.b16 %v440
          %v644 = vunpack.c.l.b16 %v441
          %v645 = vunpack.c.h.b16 %v441
          %v646 = vunpack.c.l.b16 %v442
          %v647 = vunpack.c.h.b16 %v442
          %v648 = vunpack.c.l.b16 %v443
          %v649 = vunpack.c.h.b16 %v443
          %v650 = vunpack.c.l.b16 %v444
          %v651 = vunpack.c.h.b16 %v444
          %v652 = vunpack.c.l.b16 %v445
          %v653 = vunpack.c.h.b16 %v445
          %v654 = vunpack.c.l.b16 %v446
          %v655 = vunpack.c.h.b16 %v446
          %v656 = vunpack.c.l.b16 %v447
          %v657 = vunpack.c.h.b16 %v447
          %v658 = vunpack.c.l.b16 %v448
          %v659 = vunpack.c.h.b16 %v448
          %v660 = vunpack.c.l.b16 %v449
          %v661 = vunpack.c.h.b16 %v449
          %v662 = vunpack.c.l.b16 %v450
          %v663 = vunpack.c.h.b16 %v450
          %v664 = vunpack.c.l.b16 %v451
          %v665 = vunpack.c.h.b16 %v451
          %v666 = vunpack.c.l.b16 %v452
          %v667 = vunpack.c.h.b16 %v452
          %v668 = vunpack.c.l.b16 %v453
          %v669 = vunpack.c.h.b16 %v453
          %v670 = vunpack.c.l.b16 %v454
          %v671 = vunpack.c.h.b16 %v454
          %v672 = vunpack.c.l.b16 %v455
          %v673 = vunpack.c.h.b16 %v455
          %v674 = vunpack.c.l.b16 %v456
          %v675 = vunpack.c.h.b16 %v456
          %v676 = vunpack.c.l.b16 %v457
          %v677 = vunpack.c.h.b16 %v457
          %v678 = vunpack.c.l.b16 %v458
          %v679 = vunpack.c.h.b16 %v458
          %v680 = vunpack.c.l.b16 %v459
          %v681 = vunpack.c.h.b16 %v459
          %v682 = vunpack.c.l.b16 %v460
          %v683 = vunpack.c.h.b16 %v460
          %v684 = vunpack.c.l.b16 %v461
          %v685 = vunpack.c.h.b16 %v461
          %v686 = vunpack.c.l.b16 %v462
          %v687 = vunpack.c.h.b16 %v462
          %v688 = vunpack.c.l.b16 %v463
          %v689 = vunpack.c.h.b16 %v463
          %v690 = vunpack.c.l.b16 %v464
          %v691 = vunpack.c.h.b16 %v464
          %v692 = vunpack.c.l.b16 %v465
          %v693 = vunpack.c.h.b16 %v465
          %v694 = vunpack.c.l.b16 %v466
          %v695 = vunpack.c.h.b16 %v466
          %v696 = vunpack.c.l.b16 %v467
          %v697 = vunpack.c.h.b16 %v467
          %v698 = vunpack.c.l.b16 %v468
          %v699 = vunpack.c.h.b16 %v468
          %v700 = vunpack.c.l.b16 %v469
          %v701 = vunpack.c.h.b16 %v469
          %v702 = vunpack.c.l.b16 %v470
          %v703 = vunpack.c.h.b16 %v470
          %v704 = vunpack.c.l.b16 %v471
          %v705 = vunpack.c.h.b16 %v471
          %v706 = vunpack.c.l.b16 %v472
          %v707 = vunpack.c.h.b16 %v472
          %v708 = vunpack.c.l.b16 %v473
          %v709 = vunpack.c.h.b16 %v473
          %v710 = vunpack.c.l.b16 %v474
          %v711 = vunpack.c.h.b16 %v474
          %v712 = vunpack.c.l.b16 %v475
          %v713 = vunpack.c.h.b16 %v475
          %v714 = vunpack.c.l.b16 %v476
          %v715 = vunpack.c.h.b16 %v476
          %v716 = vunpack.c.l.b16 %v477
          %v717 = vunpack.c.h.b16 %v477
          %v718 = vunpack.c.l.b16 %v478
          %v719 = vunpack.c.h.b16 %v478
          %v720 = vunpack.c.l.b16 %v479
          %v721 = vunpack.c.h.b16 %v479
          %v722 = vunpack.c.l.b16 %v480
          %v723 = vunpack.c.h.b16 %v480
          %v724 = vunpack.c.l.b16 %v481
          %v725 = vunpack.c.h.b16 %v481
          %v726 = vunpack.c.l.b16 %v482
          %v727 = vunpack.c.h.b16 %v482
          %v728 = vunpack.c.l.b16 %v483
          %v729 = vunpack.c.h.b16 %v483
          %v730 = vunpack.c.l.b16 %v484
          %v731 = vunpack.c.h.b16 %v484
          %v732 = vunpack.c.l.b16 %v485
          %v733 = vunpack.c.h.b16 %v485
          %v734 = vunpack.c.l.b16 %v486
          %v735 = vunpack.c.h.b16 %v486
          %v736 = vunpack.c.l.b16 %v487
          %v737 = vunpack.c.h.b16 %v487
          %v738 = vunpack.c.l.b16 %v488
          %v739 = vunpack.c.h.b16 %v488
          %v740 = vunpack.c.l.b16 %v489
          %v741 = vunpack.c.h.b16 %v489
          %v742 = vunpack.c.l.b16 %v490
          %v743 = vunpack.c.h.b16 %v490
          %v744 = vunpack.c.l.b16 %v491
          %v745 = vunpack.c.h.b16 %v491
          %v746 = vunpack.c.l.b16 %v492
          %v747 = vunpack.c.h.b16 %v492
          %v748 = vunpack.c.l.b16 %v493
          %v749 = vunpack.c.h.b16 %v493
          %v750 = vunpack.c.l.b16 %v494
          %v751 = vunpack.c.h.b16 %v494
          %v752 = vunpack.c.l.b16 %v495
          %v753 = vunpack.c.h.b16 %v495
          %v754 = vunpack.c.l.b16 %v496
          %v755 = vunpack.c.h.b16 %v496
          %v756 = vunpack.c.l.b16 %v497
          %v757 = vunpack.c.h.b16 %v497
          %v758 = vunpack.c.l.b16 %v498
          %v759 = vunpack.c.h.b16 %v498
          %v760 = vunpack.c.l.b16 %v499
          %v761 = vunpack.c.h.b16 %v499
          %v762 = vunpack.c.l.b16 %v500
          %v763 = vunpack.c.h.b16 %v500
          %v764 = vunpack.c.l.b16 %v501
          %v765 = vunpack.c.h.b16 %v501
          %v766 = vunpack.c.l.b16 %v502
          %v767 = vunpack.c.h.b16 %v502
          %v768 = vunpack.c.l.b16 %v503
          %v769 = vunpack.c.h.b16 %v503
          %v770 = vunpack.c.l.b16 %v504
          %v771 = vunpack.c.h.b16 %v504
          %v772 = vunpack.c.l.b16 %v505
          %v773 = vunpack.c.h.b16 %v505
          %v774 = vunpack.c.l.b16 %v506
          %v775 = vunpack.c.h.b16 %v506
          %v776 = vunpack.c.l.b16 %v507
          %v777 = vunpack.c.h.b16 %v507
          %v778 = vunpack.c.l.b16 %v508
          %v779 = vunpack.c.h.b16 %v508
          %v780 = vunpack.c.l.b16 %v509
          %v781 = vunpack.c.h.b16 %v509
          %v782 = vunpack.c.l.b16 %v510
          %v783 = vunpack.c.h.b16 %v510
          %v784 = vunpack.c.l.b16 %v511
          %v785 = vunpack.c.h.b16 %v511
          %v786 = vunpack.c.l.b16 %v512
          %v787 = vunpack.c.h.b16 %v512
          %v788 = vunpack.c.l.b16 %v513
          %v789 = vunpack.c.h.b16 %v513
          %v790 = vunpack.c.l.b16 %v514
          %v791 = vunpack.c.h.b16 %v514
          %v792 = vunpack.c.l.b16 %v515
          %v793 = vunpack.c.h.b16 %v515
          %v794 = vunpack.c.l.b16 %v516
          %v795 = vunpack.c.h.b16 %v516
          %v796 = vunpack.c.l.b16 %v517
          %v797 = vunpack.c.h.b16 %v517
          %v798 = vunpack.c.l.b16 %v518
          %v799 = vunpack.c.h.b16 %v518
          %v800 = vunpack.c.l.b16 %v519
          %v801 = vunpack.c.h.b16 %v519
          %v802 = vunpack.c.l.b16 %v520
          %v803 = vunpack.c.h.b16 %v520
          %v804 = vunpack.c.l.b16 %v521
          %v805 = vunpack.c.h.b16 %v521
          %v806 = vunpack.c.l.b16 %v522
          %v807 = vunpack.c.h.b16 %v522
          %v808 = vunpack.c.l.b16 %v523
          %v809 = vunpack.c.h.b16 %v523
          %v810 = vunpack.c.l.b16 %v524
          %v811 = vunpack.c.h.b16 %v524
          %v812 = vunpack.c.l.b16 %v525
          %v813 = vunpack.c.h.b16 %v525
          %v814 = vpack.c.b16 %v628, %v622
          %v815 = vpack.c.b16 %v629, %v623
          %v816 = vpack.c.b16 %v630, %v624
          %v817 = vpack.c.b16 %v631, %v625
          %v818 = vpack.c.b16 %v632, %v626
          %v819 = vpack.c.b16 %v633, %v627
          %v820 = vpack.c.b16 %v640, %v634
          %v821 = vpack.c.b16 %v641, %v635
          %v822 = vpack.c.b16 %v642, %v636
          %v823 = vpack.c.b16 %v643, %v637
          %v824 = vpack.c.b16 %v644, %v638
          %v825 = vpack.c.b16 %v645, %v639
          %v826 = vpack.c.b16 %v652, %v646
          %v827 = vpack.c.b16 %v653, %v647
          %v828 = vpack.c.b16 %v654, %v648
          %v829 = vpack.c.b16 %v655, %v649
          %v830 = vpack.c.b16 %v656, %v650
          %v831 = vpack.c.b16 %v657, %v651
          %v832 = vpack.c.b16 %v664, %v658
          %v833 = vpack.c.b16 %v665, %v659
          %v834 = vpack.c.b16 %v666, %v660
          %v835 = vpack.c.b16 %v667, %v661
          %v836 = vpack.c.b16 %v668, %v662
          %v837 = vpack.c.b16 %v669, %v663
          %v838 = vpack.c.b16 %v676, %v670
          %v839 = vpack.c.b16 %v677, %v671
          %v840 = vpack.c.b16 %v678, %v672
          %v841 = vpack.c.b16 %v679, %v673
          %v842 = vpack.c.b16 %v680, %v674
          %v843 = vpack.c.b16 %v681, %v675
          %v844 = vpack.c.b16 %v688, %v682
          %v845 = vpack.c.b16 %v689, %v683
          %v846 = vpack.c.b16 %v690, %v684
          %v847 = vpack.c.b16 %v691, %v685
          %v848 = vpack.c.b16 %v692, %v686
          %v849 = vpack.c.b16 %v693, %v687
          %v850 = vpack.c.b16 %v700, %v694
          %v851 = vpack.c.b16 %v701, %v695
          %v852 = vpack.c.b16 %v702, %v696
          %v853 = vpack.c.b16 %v703, %v697
          %v854 = vpack.c.b16 %v704, %v698
          %v855 = vpack.c.b16 %v705, %v699
          %v856 = vpack.c.b16 %v712, %v706
          %v857 = vpack.c.b16 %v713, %v707
          %v858 = vpack.c.b16 %v714, %v708
          %v859 = vpack.c.b16 %v715, %v709
          %v860 = vpack.c.b16 %v716, %v710
          %v861 = vpack.c.b16 %v717, %v711
          %v862 = vpack.c.b16 %v724, %v718
          %v863 = vpack.c.b16 %v725, %v719
          %v864 = vpack.c.b16 %v726, %v720
          %v865 = vpack.c.b16 %v727, %v721
          %v866 = vpack.c.b16 %v728, %v722
          %v867 = vpack.c.b16 %v729, %v723
          %v868 = vpack.c.b16 %v736, %v730
          %v869 = vpack.c.b16 %v737, %v731
          %v870 = vpack.c.b16 %v738, %v732
          %v871 = vpack.c.b16 %v739, %v733
          %v872 = vpack.c.b16 %v740, %v734
          %v873 = vpack.c.b16 %v741, %v735
          %v874 = vpack.c.b16 %v748, %v742
          %v875 = vpack.c.b16 %v749, %v743
          %v876 = vpack.c.b16 %v750, %v744
          %v877 = vpack.c.b16 %v751, %v745
          %v878 = vpack.c.b16 %v752, %v746
          %v879 = vpack.c.b16 %v753, %v747
          %v880 = vpack.c.b16 %v760, %v754
          %v881 = vpack.c.b16 %v761, %v755
          %v882 = vpack.c.b16 %v762, %v756
          %v883 = vpack.c.b16 %v763, %v757
          %v884 = vpack.c.b16 %v764, %v758
          %v885 = vpack.c.b16 %v765, %v759
          %v886 = vpack.c.b16 %v772, %v766
          %v887 = vpack.c.b16 %v773, %v767
          %v888 = vpack.c.b16 %v774, %v768
          %v889 = vpack.c.b16 %v775, %v769
          %v890 = vpack.c.b16 %v776, %v770
          %v891 = vpack.c.b16 %v777, %v771
          %v892 = vpack.c.b16 %v784, %v778
          %v893 = vpack.c.b16 %v785, %v779
          %v894 = vpack.c.b16 %v786, %v780
          %v895 = vpack.c.b16 %v787, %v781
          %v896 = vpack.c.b16 %v788, %v782
          %v897 = vpack.c.b16 %v789, %v783
          %v898 = vpack.c.b16 %v796, %v790
          %v899 = vpack.c.b16 %v797, %v791
          %v900 = vpack.c.b16 %v798, %v792
          %v901 = vpack.c.b16 %v799, %v793
          %v902 = vpack.c.b16 %v800, %v794
          %v903 = vpack.c.b16 %v801, %v795
          %v904 = vpack.c.b16 %v808, %v802
          %v905 = vpack.c.b16 %v809, %v803
          %v906 = vpack.c.b16 %v810, %v804
          %v907 = vpack.c.b16 %v811, %v805
          %v908 = vpack.c.b16 %v812, %v806
          %v909 = vpack.c.b16 %v813, %v807
          %1006 = vmatprep.subr.bf16.mxu0 %v815
          %1007 = vmatpush1.bf16.msra.mxu0 %v814
          %1008 = vmatprep.subr.bf16.mxu0 %v821
          %1009 = vmatpush1.bf16.msra.mxu0 %v820
          %1010 = vmatprep.subr.bf16.mxu0 %v827
          %1011 = vmatpush1.bf16.msra.mxu0 %v826
          %1012 = vmatprep.subr.bf16.mxu0 %v833
          %1013 = vmatpush1.bf16.msra.mxu0 %v832
          %1014 = vmatprep.subr.bf16.mxu0 %v839
          %1015 = vmatpush1.bf16.msra.mxu0 %v838
          %1016 = vmatprep.subr.bf16.mxu0 %v845
          %1017 = vmatpush1.bf16.msra.mxu0 %v844
          %1018 = vmatprep.subr.bf16.mxu0 %v851
          %1019 = vmatpush1.bf16.msra.mxu0 %v850
          %1020 = vmatprep.subr.bf16.mxu0 %v857
          %1021 = vmatpush1.bf16.msra.mxu0 %v856
          %1022 = vmatprep.subr.bf16.mxu0 %v863
          %1023 = vmatpush1.bf16.msra.mxu0 %v862
          %1024 = vmatprep.subr.bf16.mxu0 %v869
          %1025 = vmatpush1.bf16.msra.mxu0 %v868
          %1026 = vmatprep.subr.bf16.mxu0 %v875
          %1027 = vmatpush1.bf16.msra.mxu0 %v874
          %1028 = vmatprep.subr.bf16.mxu0 %v881
          %1029 = vmatpush1.bf16.msra.mxu0 %v880
          %1030 = vmatprep.subr.bf16.mxu0 %v887
          %1031 = vmatpush1.bf16.msra.mxu0 %v886
          %1032 = vmatprep.subr.bf16.mxu0 %v893
          %1033 = vmatpush1.bf16.msra.mxu0 %v892
          %1034 = vmatprep.subr.bf16.mxu0 %v899
          %1035 = vmatpush1.bf16.msra.mxu0 %v898
          %1036 = vmatprep.subr.bf16.mxu0 %v905
          %1037 = vmatpush1.bf16.msra.mxu0 %v904
          %1038 = vmatprep.mubr.bf16.mxu0 %v429
          %1039 = vmatmul.mubr.bf16.gmra.mrb[0].mxu0 %v428
          %v1040 = vpop.f32.mrb[0].mxu0
          %v1041 = vadd.f32 0.0, %v1040
          %v1042 = vpop.f32.mrb[0].mxu0
          %v1043 = vadd.f32 0.0, %v1042
          %v1044 = vpop.f32.mrb[0].mxu0
          %v1045 = vadd.f32 0.0, %v1044
          %v1046 = vpop.f32.mrb[0].mxu0
          %v1047 = vadd.f32 0.0, %v1046
          %1048 = vdwg.mxu0
          %1049 = vmatprep.subr.bf16.mxu0 %v817
          %1050 = vmatpush1.bf16.msra.mxu0 %v816
          %1051 = vmatprep.subr.bf16.mxu0 %v823
          %1052 = vmatpush1.bf16.msra.mxu0 %v822
          %1053 = vmatprep.subr.bf16.mxu0 %v829
          %1054 = vmatpush1.bf16.msra.mxu0 %v828
          %1055 = vmatprep.subr.bf16.mxu0 %v835
          %1056 = vmatpush1.bf16.msra.mxu0 %v834
          %1057 = vmatprep.subr.bf16.mxu0 %v841
          %1058 = vmatpush1.bf16.msra.mxu0 %v840
          %1059 = vmatprep.subr.bf16.mxu0 %v847
          %1060 = vmatpush1.bf16.msra.mxu0 %v846
          %1061 = vmatprep.subr.bf16.mxu0 %v853
          %1062 = vmatpush1.bf16.msra.mxu0 %v852
          %1063 = vmatprep.subr.bf16.mxu0 %v859
          %1064 = vmatpush1.bf16.msra.mxu0 %v858
          %1065 = vmatprep.subr.bf16.mxu0 %v865
          %1066 = vmatpush1.bf16.msra.mxu0 %v864
          %1067 = vmatprep.subr.bf16.mxu0 %v871
          %1068 = vmatpush1.bf16.msra.mxu0 %v870
          %1069 = vmatprep.subr.bf16.mxu0 %v877
          %1070 = vmatpush1.bf16.msra.mxu0 %v876
          %1071 = vmatprep.subr.bf16.mxu0 %v883
          %1072 = vmatpush1.bf16.msra.mxu0 %v882
          %1073 = vmatprep.subr.bf16.mxu0 %v889
          %1074 = vmatpush1.bf16.msra.mxu0 %v888
          %1075 = vmatprep.subr.bf16.mxu0 %v895
          %1076 = vmatpush1.bf16.msra.mxu0 %v894
          %1077 = vmatprep.subr.bf16.mxu0 %v901
          %1078 = vmatpush1.bf16.msra.mxu0 %v900
          %1079 = vmatprep.subr.bf16.mxu0 %v907
          %1080 = vmatpush1.bf16.msra.mxu0 %v906
          %1081 = vmatprep.mubr.bf16.mxu0 %v429
          %1082 = vmatmul.mubr.bf16.gmra.mrb[0].mxu0 %v428
          %v1083 = vpop.f32.mrb[0].mxu0
          %v1084 = vadd.f32 0.0, %v1083
          %v1085 = vpop.f32.mrb[0].mxu0
          %v1086 = vadd.f32 0.0, %v1085
          %v1087 = vpop.f32.mrb[0].mxu0
          %v1088 = vadd.f32 0.0, %v1087
          %v1089 = vpop.f32.mrb[0].mxu0
          %v1090 = vadd.f32 0.0, %v1089
          %1091 = vdwg.mxu0
          %1092 = vmatprep.subr.bf16.mxu0 %v819
          %1093 = vmatpush1.bf16.msra.mxu0 %v818
          %1094 = vmatprep.subr.bf16.mxu0 %v825
          %1095 = vmatpush1.bf16.msra.mxu0 %v824
          %1096 = vmatprep.subr.bf16.mxu0 %v831
          %1097 = vmatpush1.bf16.msra.mxu0 %v830
          %1098 = vmatprep.subr.bf16.mxu0 %v837
          %1099 = vmatpush1.bf16.msra.mxu0 %v836
          %1100 = vmatprep.subr.bf16.mxu0 %v843
          %1101 = vmatpush1.bf16.msra.mxu0 %v842
          %1102 = vmatprep.subr.bf16.mxu0 %v849
          %1103 = vmatpush1.bf16.msra.mxu0 %v848
          %1104 = vmatprep.subr.bf16.mxu0 %v855
          %1105 = vmatpush1.bf16.msra.mxu0 %v854
          %1106 = vmatprep.subr.bf16.mxu0 %v861
          %1107 = vmatpush1.bf16.msra.mxu0 %v860
          %1108 = vmatprep.subr.bf16.mxu0 %v867
          %1109 = vmatpush1.bf16.msra.mxu0 %v866
          %1110 = vmatprep.subr.bf16.mxu0 %v873
          %1111 = vmatpush1.bf16.msra.mxu0 %v872
          %1112 = vmatprep.subr.bf16.mxu0 %v879
          %1113 = vmatpush1.bf16.msra.mxu0 %v878
          %1114 = vmatprep.subr.bf16.mxu0 %v885
          %1115 = vmatpush1.bf16.msra.mxu0 %v884
          %1116 = vmatprep.subr.bf16.mxu0 %v891
          %1117 = vmatpush1.bf16.msra.mxu0 %v890
          %1118 = vmatprep.subr.bf16.mxu0 %v897
          %1119 = vmatpush1.bf16.msra.mxu0 %v896
          %1120 = vmatprep.subr.bf16.mxu0 %v903
          %1121 = vmatpush1.bf16.msra.mxu0 %v902
          %1122 = vmatprep.subr.bf16.mxu0 %v909
          %1123 = vmatpush1.bf16.msra.mxu0 %v908
          %1124 = vmatprep.mubr.bf16.mxu0 %v429
          %1125 = vmatmul.mubr.bf16.gmra.mrb[0].mxu0 %v428
          %v1126 = vpop.f32.mrb[0].mxu0
          %v1127 = vadd.f32 0.0, %v1126
          %v1128 = vpop.f32.mrb[0].mxu0
          %v1129 = vadd.f32 0.0, %v1128
          %v1130 = vpop.f32.mrb[0].mxu0
          %v1131 = vadd.f32 0.0, %v1130
          %v1132 = vpop.f32.mrb[0].mxu0
          %v1133 = vadd.f32 0.0, %v1132
          %1134 = vdwg.mxu0
          %v1135 = vadd.f32 %v416, %v1041
          %v1136 = vadd.f32 %v417, %v1043
          %v1137 = vadd.f32 %v422, %v1045
          %v1138 = vadd.f32 %v423, %v1047
          %v1139 = vmul.f32 %v1135, 0.5
          %v1140 = vmul.f32 %v1136, 0.5
          %v1141 = vmul.f32 %v1137, 0.5
          %v1142 = vmul.f32 %v1138, 0.5
          %v1143 = vtanh.pop %v1139
          %v1144 = vtanh.pop %v1140
          %v1145 = vtanh.pop %v1141
          %v1146 = vtanh.pop %v1142
          %v1147 = vmul.f32 %v1143, 0.5
          %v1148 = vmul.f32 %v1144, 0.5
          %v1149 = vmul.f32 %v1145, 0.5
          %v1150 = vmul.f32 %v1146, 0.5
          %v1151 = vadd.f32 %v1147, 0.5
          %v1152 = vadd.f32 %v1148, 0.5
          %v1153 = vadd.f32 %v1149, 0.5
          %v1154 = vadd.f32 %v1150, 0.5
          %v1155 = vadd.f32 %v418, %v1084
          %v1156 = vadd.f32 %v419, %v1086
          %v1157 = vadd.f32 %v424, %v1088
          %v1158 = vadd.f32 %v425, %v1090
          %v1159 = vmul.f32 %v1155, 0.5
          %v1160 = vmul.f32 %v1156, 0.5
          %v1161 = vmul.f32 %v1157, 0.5
          %v1162 = vmul.f32 %v1158, 0.5
          %v1163 = vtanh.pop %v1159
          %v1164 = vtanh.pop %v1160
          %v1165 = vtanh.pop %v1161
          %v1166 = vtanh.pop %v1162
          %v1167 = vmul.f32 %v1163, 0.5
          %v1168 = vmul.f32 %v1164, 0.5
          %v1169 = vmul.f32 %v1165, 0.5
          %v1170 = vmul.f32 %v1166, 0.5
          %v1171 = vadd.f32 %v1167, 0.5
          %v1172 = vadd.f32 %v1168, 0.5
          %v1173 = vadd.f32 %v1169, 0.5
          %v1174 = vadd.f32 %v1170, 0.5
          %v1175 = vadd.f32 %v1127, %v399
          %v1176 = vadd.f32 %v1129, %v403
          %v1177 = vadd.f32 %v1131, %v399
          %v1178 = vadd.f32 %v1133, %v403
          %v1179 = vmul.f32 %v1151, %v1175
          %v1180 = vmul.f32 %v1152, %v1176
          %v1181 = vmul.f32 %v1153, %v1177
          %v1182 = vmul.f32 %v1154, %v1178
          %v1183 = vadd.f32 %v420, %v1179
          %v1184 = vadd.f32 %v421, %v1180
          %v1185 = vadd.f32 %v426, %v1181
          %v1186 = vadd.f32 %v427, %v1182
          %v1187 = vtanh.pop %v1183
          %v1188 = vtanh.pop %v1184
          %v1189 = vtanh.pop %v1185
          %v1190 = vtanh.pop %v1186
          %v1191 = vsub.f32 1.0, %v1171
          %v1192 = vsub.f32 1.0, %v1172
          %v1193 = vsub.f32 1.0, %v1173
          %v1194 = vsub.f32 1.0, %v1174
          %v1195 = vmul.f32 %v1191, %v1187
          %v1196 = vmul.f32 %v1192, %v1188
          %v1197 = vmul.f32 %v1193, %v1189
          %v1198 = vmul.f32 %v1194, %v1190
          %v1199 = vmul.f32 %v1171, %v406
          %v1200 = vmul.f32 %v1172, %v407
          %v1201 = vmul.f32 %v1173, %v408
          %v1202 = vmul.f32 %v1174, %v409
          %v1203 = vadd.f32 %v1195, %v1199
          %v1204 = vadd.f32 %v1196, %v1200
          %v1205 = vadd.f32 %v1197, %v1201
          %v1206 = vadd.f32 %v1198, %v1202
          %v1207 = vstv %s378
          %vm1208 = vcmp.gt.s32.totalorder %v392, %v1207
          %vm1209 = vcmp.gt.s32.totalorder %v393, %v1207
          %v1210 = vsel %vm1208, 1, 0
          %v1211 = vsel %vm1209, 1, 0
          %1212 = vset.pattern.permute.xlu0 0
          %1213 = vperm.xlu0 %1212, %v1210
          %v1214 = vpop.permute.xlu0 %1213
          %1215 = vset.pattern.permute.xlu0 0
          %1216 = vperm.xlu0 %1215, %v1211
          %v1217 = vpop.permute.xlu0 %1216
          %vm1218 = vcmp.eq.s32.totalorder %v1214, 1
          %vm1219 = vcmp.eq.s32.totalorder %v1217, 1
          %v1220 = vsel %vm1218, %v1203, %v406
          %v1221 = vsel %vm1218, %v1204, %v407
          %v1222 = vsel %vm1219, %v1205, %v408
          %v1223 = vsel %vm1219, %v1206, %v409
          %s1224 = scalar_lea.vmem %s331, 48 [#allocation5]
          %v1225 = vld [vmem:[%s1224] sm:$0xff]
          %v1226 = vld [vmem:[%s1224 + $0x8] sm:$0xff]
          %v1227 = vld [vmem:[%s1224 + $0x10] sm:$0xff]
          %v1228 = vld [vmem:[%s1224 + $0x18] sm:$0xff]
          %v1229 = vld [vmem:[%s1224 + $0x20] sm:$0xff]
          %v1230 = vld [vmem:[%s1224 + $0x28] sm:$0xff]
          %v1231 = vunpack.c.l.bf16 %v1225
          %v1232 = vunpack.c.h.bf16 %v1225
          %v1233 = vunpack.c.l.bf16 %v1226
          %v1234 = vunpack.c.h.bf16 %v1226
          %v1235 = vunpack.c.l.bf16 %v1227
          %v1236 = vunpack.c.h.bf16 %v1227
          %v1237 = vunpack.c.l.bf16 %v1228
          %v1238 = vunpack.c.h.bf16 %v1228
          %v1239 = vunpack.c.l.bf16 %v1229
          %v1240 = vunpack.c.h.bf16 %v1229
          %v1241 = vunpack.c.l.bf16 %v1230
          %v1242 = vunpack.c.h.bf16 %v1230
          %v1243 = vpack.c.bf16 %v1222, %v1220
          %v1244 = vpack.c.bf16 %v1223, %v1221
          %1245 = vmatprep.subr.bf16.mxu0 %v815
          %1246 = vmatpush1.bf16.msra.mxu0 %v814
          %1247 = vmatprep.subr.bf16.mxu0 %v821
          %1248 = vmatpush1.bf16.msra.mxu0 %v820
          %1249 = vmatprep.subr.bf16.mxu0 %v827
          %1250 = vmatpush1.bf16.msra.mxu0 %v826
          %1251 = vmatprep.subr.bf16.mxu0 %v833
          %1252 = vmatpush1.bf16.msra.mxu0 %v832
          %1253 = vmatprep.subr.bf16.mxu0 %v839
          %1254 = vmatpush1.bf16.msra.mxu0 %v838
          %1255 = vmatprep.subr.bf16.mxu0 %v845
          %1256 = vmatpush1.bf16.msra.mxu0 %v844
          %1257 = vmatprep.subr.bf16.mxu0 %v851
          %1258 = vmatpush1.bf16.msra.mxu0 %v850
          %1259 = vmatprep.subr.bf16.mxu0 %v857
          %1260 = vmatpush1.bf16.msra.mxu0 %v856
          %1261 = vmatprep.subr.bf16.mxu0 %v863
          %1262 = vmatpush1.bf16.msra.mxu0 %v862
          %1263 = vmatprep.subr.bf16.mxu0 %v869
          %1264 = vmatpush1.bf16.msra.mxu0 %v868
          %1265 = vmatprep.subr.bf16.mxu0 %v875
          %1266 = vmatpush1.bf16.msra.mxu0 %v874
          %1267 = vmatprep.subr.bf16.mxu0 %v881
          %1268 = vmatpush1.bf16.msra.mxu0 %v880
          %1269 = vmatprep.subr.bf16.mxu0 %v887
          %1270 = vmatpush1.bf16.msra.mxu0 %v886
          %1271 = vmatprep.subr.bf16.mxu0 %v893
          %1272 = vmatpush1.bf16.msra.mxu0 %v892
          %1273 = vmatprep.subr.bf16.mxu0 %v899
          %1274 = vmatpush1.bf16.msra.mxu0 %v898
          %1275 = vmatprep.subr.bf16.mxu0 %v905
          %1276 = vmatpush1.bf16.msra.mxu0 %v904
          %1277 = vmatprep.mubr.bf16.mxu0 %v1244
          %1278 = vmatmul.mubr.bf16.gmra.mrb[0].mxu0 %v1243
          %v1279 = vpop.f32.mrb[0].mxu0
          %v1280 = vadd.f32 0.0, %v1279
          %v1281 = vpop.f32.mrb[0].mxu0
          %v1282 = vadd.f32 0.0, %v1281
          %v1283 = vpop.f32.mrb[0].mxu0
          %v1284 = vadd.f32 0.0, %v1283
          %v1285 = vpop.f32.mrb[0].mxu0
          %v1286 = vadd.f32 0.0, %v1285
          %1287 = vdwg.mxu0
          %1288 = vmatprep.subr.bf16.mxu0 %v817
          %1289 = vmatpush1.bf16.msra.mxu0 %v816
          %1290 = vmatprep.subr.bf16.mxu0 %v823
          %1291 = vmatpush1.bf16.msra.mxu0 %v822
          %1292 = vmatprep.subr.bf16.mxu0 %v829
          %1293 = vmatpush1.bf16.msra.mxu0 %v828
          %1294 = vmatprep.subr.bf16.mxu0 %v835
          %1295 = vmatpush1.bf16.msra.mxu0 %v834
          %1296 = vmatprep.subr.bf16.mxu0 %v841
          %1297 = vmatpush1.bf16.msra.mxu0 %v840
          %1298 = vmatprep.subr.bf16.mxu0 %v847
          %1299 = vmatpush1.bf16.msra.mxu0 %v846
          %1300 = vmatprep.subr.bf16.mxu0 %v853
          %1301 = vmatpush1.bf16.msra.mxu0 %v852
          %1302 = vmatprep.subr.bf16.mxu0 %v859
          %1303 = vmatpush1.bf16.msra.mxu0 %v858
          %1304 = vmatprep.subr.bf16.mxu0 %v865
          %1305 = vmatpush1.bf16.msra.mxu0 %v864
          %1306 = vmatprep.subr.bf16.mxu0 %v871
          %1307 = vmatpush1.bf16.msra.mxu0 %v870
          %1308 = vmatprep.subr.bf16.mxu0 %v877
          %1309 = vmatpush1.bf16.msra.mxu0 %v876
          %1310 = vmatprep.subr.bf16.mxu0 %v883
          %1311 = vmatpush1.bf16.msra.mxu0 %v882
          %1312 = vmatprep.subr.bf16.mxu0 %v889
          %1313 = vmatpush1.bf16.msra.mxu0 %v888
          %1314 = vmatprep.subr.bf16.mxu0 %v895
          %1315 = vmatpush1.bf16.msra.mxu0 %v894
          %1316 = vmatprep.subr.bf16.mxu0 %v901
          %1317 = vmatpush1.bf16.msra.mxu0 %v900
          %1318 = vmatprep.subr.bf16.mxu0 %v907
          %1319 = vmatpush1.bf16.msra.mxu0 %v906
          %1320 = vmatprep.mubr.bf16.mxu0 %v1244
          %1321 = vmatmul.mubr.bf16.gmra.mrb[0].mxu0 %v1243
          %v1322 = vpop.f32.mrb[0].mxu0
          %v1323 = vadd.f32 0.0, %v1322
          %v1324 = vpop.f32.mrb[0].mxu0
          %v1325 = vadd.f32 0.0, %v1324
          %v1326 = vpop.f32.mrb[0].mxu0
          %v1327 = vadd.f32 0.0, %v1326
          %v1328 = vpop.f32.mrb[0].mxu0
          %v1329 = vadd.f32 0.0, %v1328
          %1330 = vdwg.mxu0
          %1331 = vmatprep.subr.bf16.mxu0 %v819
          %1332 = vmatpush1.bf16.msra.mxu0 %v818
          %1333 = vmatprep.subr.bf16.mxu0 %v825
          %1334 = vmatpush1.bf16.msra.mxu0 %v824
          %1335 = vmatprep.subr.bf16.mxu0 %v831
          %1336 = vmatpush1.bf16.msra.mxu0 %v830
          %1337 = vmatprep.subr.bf16.mxu0 %v837
          %1338 = vmatpush1.bf16.msra.mxu0 %v836
          %1339 = vmatprep.subr.bf16.mxu0 %v843
          %1340 = vmatpush1.bf16.msra.mxu0 %v842
          %1341 = vmatprep.subr.bf16.mxu0 %v849
          %1342 = vmatpush1.bf16.msra.mxu0 %v848
          %1343 = vmatprep.subr.bf16.mxu0 %v855
          %1344 = vmatpush1.bf16.msra.mxu0 %v854
          %1345 = vmatprep.subr.bf16.mxu0 %v861
          %1346 = vmatpush1.bf16.msra.mxu0 %v860
          %1347 = vmatprep.subr.bf16.mxu0 %v867
          %1348 = vmatpush1.bf16.msra.mxu0 %v866
          %1349 = vmatprep.subr.bf16.mxu0 %v873
          %1350 = vmatpush1.bf16.msra.mxu0 %v872
          %1351 = vmatprep.subr.bf16.mxu0 %v879
          %1352 = vmatpush1.bf16.msra.mxu0 %v878
          %1353 = vmatprep.subr.bf16.mxu0 %v885
          %1354 = vmatpush1.bf16.msra.mxu0 %v884
          %1355 = vmatprep.subr.bf16.mxu0 %v891
          %1356 = vmatpush1.bf16.msra.mxu0 %v890
          %1357 = vmatprep.subr.bf16.mxu0 %v897
          %1358 = vmatpush1.bf16.msra.mxu0 %v896
          %1359 = vmatprep.subr.bf16.mxu0 %v903
          %1360 = vmatpush1.bf16.msra.mxu0 %v902
          %1361 = vmatprep.subr.bf16.mxu0 %v909
          %1362 = vmatpush1.bf16.msra.mxu0 %v908
          %1363 = vmatprep.mubr.bf16.mxu0 %v1244
          %1364 = vmatmul.mubr.bf16.gmra.mrb[0].mxu0 %v1243
          %v1365 = vpop.f32.mrb[0].mxu0
          %v1366 = vadd.f32 0.0, %v1365
          %v1367 = vpop.f32.mrb[0].mxu0
          %v1368 = vadd.f32 0.0, %v1367
          %v1369 = vpop.f32.mrb[0].mxu0
          %v1370 = vadd.f32 0.0, %v1369
          %v1371 = vpop.f32.mrb[0].mxu0
          %v1372 = vadd.f32 0.0, %v1371
          %1373 = vdwg.mxu0
          %v1374 = vadd.f32 %v1231, %v1280
          %v1375 = vadd.f32 %v1232, %v1282
          %v1376 = vadd.f32 %v1237, %v1284
          %v1377 = vadd.f32 %v1238, %v1286
          %v1378 = vmul.f32 %v1374, 0.5
          %v1379 = vmul.f32 %v1375, 0.5
          %v1380 = vmul.f32 %v1376, 0.5
          %v1381 = vmul.f32 %v1377, 0.5
          %v1382 = vtanh.pop %v1378
          %v1383 = vtanh.pop %v1379
          %v1384 = vtanh.pop %v1380
          %v1385 = vtanh.pop %v1381
          %v1386 = vmul.f32 %v1382, 0.5
          %v1387 = vmul.f32 %v1383, 0.5
          %v1388 = vmul.f32 %v1384, 0.5
          %v1389 = vmul.f32 %v1385, 0.5
          %v1390 = vadd.f32 %v1386, 0.5
          %v1391 = vadd.f32 %v1387, 0.5
          %v1392 = vadd.f32 %v1388, 0.5
          %v1393 = vadd.f32 %v1389, 0.5
          %v1394 = vadd.f32 %v1233, %v1323
          %v1395 = vadd.f32 %v1234, %v1325
          %v1396 = vadd.f32 %v1239, %v1327
          %v1397 = vadd.f32 %v1240, %v1329
          %v1398 = vmul.f32 %v1394, 0.5
          %v1399 = vmul.f32 %v1395, 0.5
          %v1400 = vmul.f32 %v1396, 0.5
          %v1401 = vmul.f32 %v1397, 0.5
          %v1402 = vtanh.pop %v1398
          %v1403 = vtanh.pop %v1399
          %v1404 = vtanh.pop %v1400
          %v1405 = vtanh.pop %v1401
          %v1406 = vmul.f32 %v1402, 0.5
          %v1407 = vmul.f32 %v1403, 0.5
          %v1408 = vmul.f32 %v1404, 0.5
          %v1409 = vmul.f32 %v1405, 0.5
          %v1410 = vadd.f32 %v1406, 0.5
          %v1411 = vadd.f32 %v1407, 0.5
          %v1412 = vadd.f32 %v1408, 0.5
          %v1413 = vadd.f32 %v1409, 0.5
          %v1414 = vadd.f32 %v1366, %v399
          %v1415 = vadd.f32 %v1368, %v403
          %v1416 = vadd.f32 %v1370, %v399
          %v1417 = vadd.f32 %v1372, %v403
          %v1418 = vmul.f32 %v1390, %v1414
          %v1419 = vmul.f32 %v1391, %v1415
          %v1420 = vmul.f32 %v1392, %v1416
          %v1421 = vmul.f32 %v1393, %v1417
          %v1422 = vadd.f32 %v1235, %v1418
          %v1423 = vadd.f32 %v1236, %v1419
          %v1424 = vadd.f32 %v1241, %v1420
          %v1425 = vadd.f32 %v1242, %v1421
          %v1426 = vtanh.pop %v1422
          %v1427 = vtanh.pop %v1423
          %v1428 = vtanh.pop %v1424
          %v1429 = vtanh.pop %v1425
          %v1430 = vsub.f32 1.0, %v1410
          %v1431 = vsub.f32 1.0, %v1411
          %v1432 = vsub.f32 1.0, %v1412
          %v1433 = vsub.f32 1.0, %v1413
          %v1434 = vmul.f32 %v1430, %v1426
          %v1435 = vmul.f32 %v1431, %v1427
          %v1436 = vmul.f32 %v1432, %v1428
          %v1437 = vmul.f32 %v1433, %v1429
          %v1438 = vmul.f32 %v1410, %v1220
          %v1439 = vmul.f32 %v1411, %v1221
          %v1440 = vmul.f32 %v1412, %v1222
          %v1441 = vmul.f32 %v1413, %v1223
          %v1442 = vadd.f32 %v1434, %v1438
          %v1443 = vadd.f32 %v1435, %v1439
          %v1444 = vadd.f32 %v1436, %v1440
          %v1445 = vadd.f32 %v1437, %v1441
          %s1446 = sadd.s32 %s378, 1
          %v1447 = vstv %s1446
          %vm1448 = vcmp.gt.s32.totalorder %v392, %v1447
          %vm1449 = vcmp.gt.s32.totalorder %v393, %v1447
          %v1450 = vsel %vm1448, 1, 0
          %v1451 = vsel %vm1449, 1, 0
          %1452 = vset.pattern.permute.xlu0 0
          %1453 = vperm.xlu0 %1452, %v1450
          %v1454 = vpop.permute.xlu0 %1453
          %1455 = vset.pattern.permute.xlu0 0
          %1456 = vperm.xlu0 %1455, %v1451
          %v1457 = vpop.permute.xlu0 %1456
          %vm1458 = vcmp.eq.s32.totalorder %v1454, 1
          %vm1459 = vcmp.eq.s32.totalorder %v1457, 1
          %v1460 = vsel %vm1458, %v1442, %v1220
          %v1461 = vsel %vm1458, %v1443, %v1221
          %v1462 = vsel %vm1459, %v1444, %v1222
          %v1463 = vsel %vm1459, %v1445, %v1223
          %s1464 = scalar_lea.vmem %s331, 96 [#allocation5]
          %v1465 = vld [vmem:[%s1464] sm:$0xff]
          %v1466 = vld [vmem:[%s1464 + $0x8] sm:$0xff]
          %v1467 = vld [vmem:[%s1464 + $0x10] sm:$0xff]
          %v1468 = vld [vmem:[%s1464 + $0x18] sm:$0xff]
          %v1469 = vld [vmem:[%s1464 + $0x20] sm:$0xff]
          %v1470 = vld [vmem:[%s1464 + $0x28] sm:$0xff]
          %v1471 = vunpack.c.l.bf16 %v1465
          %v1472 = vunpack.c.h.bf16 %v1465
          %v1473 = vunpack.c.l.bf16 %v1466
          %v1474 = vunpack.c.h.bf16 %v1466
          %v1475 = vunpack.c.l.bf16 %v1467
          %v1476 = vunpack.c.h.bf16 %v1467
          %v1477 = vunpack.c.l.bf16 %v1468
          %v1478 = vunpack.c.h.bf16 %v1468
          %v1479 = vunpack.c.l.bf16 %v1469
          %v1480 = vunpack.c.h.bf16 %v1469
          %v1481 = vunpack.c.l.bf16 %v1470
          %v1482 = vunpack.c.h.bf16 %v1470
          %v1483 = vpack.c.bf16 %v1462, %v1460
          %v1484 = vpack.c.bf16 %v1463, %v1461
          %1485 = vmatprep.subr.bf16.mxu0 %v815
          %1486 = vmatpush1.bf16.msra.mxu0 %v814
          %1487 = vmatprep.subr.bf16.mxu0 %v821
          %1488 = vmatpush1.bf16.msra.mxu0 %v820
          %1489 = vmatprep.subr.bf16.mxu0 %v827
          %1490 = vmatpush1.bf16.msra.mxu0 %v826
          %1491 = vmatprep.subr.bf16.mxu0 %v833
          %1492 = vmatpush1.bf16.msra.mxu0 %v832
          %1493 = vmatprep.subr.bf16.mxu0 %v839
          %1494 = vmatpush1.bf16.msra.mxu0 %v838
          %1495 = vmatprep.subr.bf16.mxu0 %v845
          %1496 = vmatpush1.bf16.msra.mxu0 %v844
          %1497 = vmatprep.subr.bf16.mxu0 %v851
          %1498 = vmatpush1.bf16.msra.mxu0 %v850
          %1499 = vmatprep.subr.bf16.mxu0 %v857
          %1500 = vmatpush1.bf16.msra.mxu0 %v856
          %1501 = vmatprep.subr.bf16.mxu0 %v863
          %1502 = vmatpush1.bf16.msra.mxu0 %v862
          %1503 = vmatprep.subr.bf16.mxu0 %v869
          %1504 = vmatpush1.bf16.msra.mxu0 %v868
          %1505 = vmatprep.subr.bf16.mxu0 %v875
          %1506 = vmatpush1.bf16.msra.mxu0 %v874
          %1507 = vmatprep.subr.bf16.mxu0 %v881
          %1508 = vmatpush1.bf16.msra.mxu0 %v880
          %1509 = vmatprep.subr.bf16.mxu0 %v887
          %1510 = vmatpush1.bf16.msra.mxu0 %v886
          %1511 = vmatprep.subr.bf16.mxu0 %v893
          %1512 = vmatpush1.bf16.msra.mxu0 %v892
          %1513 = vmatprep.subr.bf16.mxu0 %v899
          %1514 = vmatpush1.bf16.msra.mxu0 %v898
          %1515 = vmatprep.subr.bf16.mxu0 %v905
          %1516 = vmatpush1.bf16.msra.mxu0 %v904
          %1517 = vmatprep.mubr.bf16.mxu0 %v1484
          %1518 = vmatmul.mubr.bf16.gmra.mrb[0].mxu0 %v1483
          %v1519 = vpop.f32.mrb[0].mxu0
          %v1520 = vadd.f32 0.0, %v1519
          %v1521 = vpop.f32.mrb[0].mxu0
          %v1522 = vadd.f32 0.0, %v1521
          %v1523 = vpop.f32.mrb[0].mxu0
          %v1524 = vadd.f32 0.0, %v1523
          %v1525 = vpop.f32.mrb[0].mxu0
          %v1526 = vadd.f32 0.0, %v1525
          %1527 = vdwg.mxu0
          %1528 = vmatprep.subr.bf16.mxu0 %v817
          %1529 = vmatpush1.bf16.msra.mxu0 %v816
          %1530 = vmatprep.subr.bf16.mxu0 %v823
          %1531 = vmatpush1.bf16.msra.mxu0 %v822
          %1532 = vmatprep.subr.bf16.mxu0 %v829
          %1533 = vmatpush1.bf16.msra.mxu0 %v828
          %1534 = vmatprep.subr.bf16.mxu0 %v835
          %1535 = vmatpush1.bf16.msra.mxu0 %v834
          %1536 = vmatprep.subr.bf16.mxu0 %v841
          %1537 = vmatpush1.bf16.msra.mxu0 %v840
          %1538 = vmatprep.subr.bf16.mxu0 %v847
          %1539 = vmatpush1.bf16.msra.mxu0 %v846
          %1540 = vmatprep.subr.bf16.mxu0 %v853
          %1541 = vmatpush1.bf16.msra.mxu0 %v852
          %1542 = vmatprep.subr.bf16.mxu0 %v859
          %1543 = vmatpush1.bf16.msra.mxu0 %v858
          %1544 = vmatprep.subr.bf16.mxu0 %v865
          %1545 = vmatpush1.bf16.msra.mxu0 %v864
          %1546 = vmatprep.subr.bf16.mxu0 %v871
          %1547 = vmatpush1.bf16.msra.mxu0 %v870
          %1548 = vmatprep.subr.bf16.mxu0 %v877
          %1549 = vmatpush1.bf16.msra.mxu0 %v876
          %1550 = vmatprep.subr.bf16.mxu0 %v883
          %1551 = vmatpush1.bf16.msra.mxu0 %v882
          %1552 = vmatprep.subr.bf16.mxu0 %v889
          %1553 = vmatpush1.bf16.msra.mxu0 %v888
          %1554 = vmatprep.subr.bf16.mxu0 %v895
          %1555 = vmatpush1.bf16.msra.mxu0 %v894
          %1556 = vmatprep.subr.bf16.mxu0 %v901
          %1557 = vmatpush1.bf16.msra.mxu0 %v900
          %1558 = vmatprep.subr.bf16.mxu0 %v907
          %1559 = vmatpush1.bf16.msra.mxu0 %v906
          %1560 = vmatprep.mubr.bf16.mxu0 %v1484
          %1561 = vmatmul.mubr.bf16.gmra.mrb[0].mxu0 %v1483
          %v1562 = vpop.f32.mrb[0].mxu0
          %v1563 = vadd.f32 0.0, %v1562
          %v1564 = vpop.f32.mrb[0].mxu0
          %v1565 = vadd.f32 0.0, %v1564
          %v1566 = vpop.f32.mrb[0].mxu0
          %v1567 = vadd.f32 0.0, %v1566
          %v1568 = vpop.f32.mrb[0].mxu0
          %v1569 = vadd.f32 0.0, %v1568
          %1570 = vdwg.mxu0
          %1571 = vmatprep.subr.bf16.mxu0 %v819
          %1572 = vmatpush1.bf16.msra.mxu0 %v818
          %1573 = vmatprep.subr.bf16.mxu0 %v825
          %1574 = vmatpush1.bf16.msra.mxu0 %v824
          %1575 = vmatprep.subr.bf16.mxu0 %v831
          %1576 = vmatpush1.bf16.msra.mxu0 %v830
          %1577 = vmatprep.subr.bf16.mxu0 %v837
          %1578 = vmatpush1.bf16.msra.mxu0 %v836
          %1579 = vmatprep.subr.bf16.mxu0 %v843
          %1580 = vmatpush1.bf16.msra.mxu0 %v842
          %1581 = vmatprep.subr.bf16.mxu0 %v849
          %1582 = vmatpush1.bf16.msra.mxu0 %v848
          %1583 = vmatprep.subr.bf16.mxu0 %v855
          %1584 = vmatpush1.bf16.msra.mxu0 %v854
          %1585 = vmatprep.subr.bf16.mxu0 %v861
          %1586 = vmatpush1.bf16.msra.mxu0 %v860
          %1587 = vmatprep.subr.bf16.mxu0 %v867
          %1588 = vmatpush1.bf16.msra.mxu0 %v866
          %1589 = vmatprep.subr.bf16.mxu0 %v873
          %1590 = vmatpush1.bf16.msra.mxu0 %v872
          %1591 = vmatprep.subr.bf16.mxu0 %v879
          %1592 = vmatpush1.bf16.msra.mxu0 %v878
          %1593 = vmatprep.subr.bf16.mxu0 %v885
          %1594 = vmatpush1.bf16.msra.mxu0 %v884
          %1595 = vmatprep.subr.bf16.mxu0 %v891
          %1596 = vmatpush1.bf16.msra.mxu0 %v890
          %1597 = vmatprep.subr.bf16.mxu0 %v897
          %1598 = vmatpush1.bf16.msra.mxu0 %v896
          %1599 = vmatprep.subr.bf16.mxu0 %v903
          %1600 = vmatpush1.bf16.msra.mxu0 %v902
          %1601 = vmatprep.subr.bf16.mxu0 %v909
          %1602 = vmatpush1.bf16.msra.mxu0 %v908
          %1603 = vmatprep.mubr.bf16.mxu0 %v1484
          %1604 = vmatmul.mubr.bf16.gmra.mrb[0].mxu0 %v1483
          %v1605 = vpop.f32.mrb[0].mxu0
          %v1606 = vadd.f32 0.0, %v1605
          %v1607 = vpop.f32.mrb[0].mxu0
          %v1608 = vadd.f32 0.0, %v1607
          %v1609 = vpop.f32.mrb[0].mxu0
          %v1610 = vadd.f32 0.0, %v1609
          %v1611 = vpop.f32.mrb[0].mxu0
          %v1612 = vadd.f32 0.0, %v1611
          %1613 = vdwg.mxu0
          %v1614 = vadd.f32 %v1471, %v1520
          %v1615 = vadd.f32 %v1472, %v1522
          %v1616 = vadd.f32 %v1477, %v1524
          %v1617 = vadd.f32 %v1478, %v1526
          %v1618 = vmul.f32 %v1614, 0.5
          %v1619 = vmul.f32 %v1615, 0.5
          %v1620 = vmul.f32 %v1616, 0.5
          %v1621 = vmul.f32 %v1617, 0.5
          %v1622 = vtanh.pop %v1618
          %v1623 = vtanh.pop %v1619
          %v1624 = vtanh.pop %v1620
          %v1625 = vtanh.pop %v1621
          %v1626 = vmul.f32 %v1622, 0.5
          %v1627 = vmul.f32 %v1623, 0.5
          %v1628 = vmul.f32 %v1624, 0.5
          %v1629 = vmul.f32 %v1625, 0.5
          %v1630 = vadd.f32 %v1626, 0.5
          %v1631 = vadd.f32 %v1627, 0.5
          %v1632 = vadd.f32 %v1628, 0.5
          %v1633 = vadd.f32 %v1629, 0.5
          %v1634 = vadd.f32 %v1473, %v1563
          %v1635 = vadd.f32 %v1474, %v1565
          %v1636 = vadd.f32 %v1479, %v1567
          %v1637 = vadd.f32 %v1480, %v1569
          %v1638 = vmul.f32 %v1634, 0.5
          %v1639 = vmul.f32 %v1635, 0.5
          %v1640 = vmul.f32 %v1636, 0.5
          %v1641 = vmul.f32 %v1637, 0.5
          %v1642 = vtanh.pop %v1638
          %v1643 = vtanh.pop %v1639
          %v1644 = vtanh.pop %v1640
          %v1645 = vtanh.pop %v1641
          %v1646 = vmul.f32 %v1642, 0.5
          %v1647 = vmul.f32 %v1643, 0.5
          %v1648 = vmul.f32 %v1644, 0.5
          %v1649 = vmul.f32 %v1645, 0.5
          %v1650 = vadd.f32 %v1646, 0.5
          %v1651 = vadd.f32 %v1647, 0.5
          %v1652 = vadd.f32 %v1648, 0.5
          %v1653 = vadd.f32 %v1649, 0.5
          %v1654 = vadd.f32 %v1606, %v399
          %v1655 = vadd.f32 %v1608, %v403
          %v1656 = vadd.f32 %v1610, %v399
          %v1657 = vadd.f32 %v1612, %v403
          %v1658 = vmul.f32 %v1630, %v1654
          %v1659 = vmul.f32 %v1631, %v1655
          %v1660 = vmul.f32 %v1632, %v1656
          %v1661 = vmul.f32 %v1633, %v1657
          %v1662 = vadd.f32 %v1475, %v1658
          %v1663 = vadd.f32 %v1476, %v1659
          %v1664 = vadd.f32 %v1481, %v1660
          %v1665 = vadd.f32 %v1482, %v1661
          %v1666 = vtanh.pop %v1662
          %v1667 = vtanh.pop %v1663
          %v1668 = vtanh.pop %v1664
          %v1669 = vtanh.pop %v1665
          %v1670 = vsub.f32 1.0, %v1650
          %v1671 = vsub.f32 1.0, %v1651
          %v1672 = vsub.f32 1.0, %v1652
          %v1673 = vsub.f32 1.0, %v1653
          %v1674 = vmul.f32 %v1670, %v1666
          %v1675 = vmul.f32 %v1671, %v1667
          %v1676 = vmul.f32 %v1672, %v1668
          %v1677 = vmul.f32 %v1673, %v1669
          %v1678 = vmul.f32 %v1650, %v1460
          %v1679 = vmul.f32 %v1651, %v1461
          %v1680 = vmul.f32 %v1652, %v1462
          %v1681 = vmul.f32 %v1653, %v1463
          %v1682 = vadd.f32 %v1674, %v1678
          %v1683 = vadd.f32 %v1675, %v1679
          %v1684 = vadd.f32 %v1676, %v1680
          %v1685 = vadd.f32 %v1677, %v1681
          %s1686 = sadd.s32 %s378, 2
          %v1687 = vstv %s1686
          %vm1688 = vcmp.gt.s32.totalorder %v392, %v1687
          %vm1689 = vcmp.gt.s32.totalorder %v393, %v1687
          %v1690 = vsel %vm1688, 1, 0
          %v1691 = vsel %vm1689, 1, 0
          %1692 = vset.pattern.permute.xlu0 0
          %1693 = vperm.xlu0 %1692, %v1690
          %v1694 = vpop.permute.xlu0 %1693
          %1695 = vset.pattern.permute.xlu0 0
          %1696 = vperm.xlu0 %1695, %v1691
          %v1697 = vpop.permute.xlu0 %1696
          %vm1698 = vcmp.eq.s32.totalorder %v1694, 1
          %vm1699 = vcmp.eq.s32.totalorder %v1697, 1
          %v1700 = vsel %vm1698, %v1682, %v1460
          %v1701 = vsel %vm1698, %v1683, %v1461
          %v1702 = vsel %vm1699, %v1684, %v1462
          %v1703 = vsel %vm1699, %v1685, %v1463
          %s1704 = scalar_lea.vmem %s331, 144 [#allocation5]
          %v1705 = vld [vmem:[%s1704] sm:$0xff]
          %v1706 = vld [vmem:[%s1704 + $0x8] sm:$0xff]
          %v1707 = vld [vmem:[%s1704 + $0x10] sm:$0xff]
          %v1708 = vld [vmem:[%s1704 + $0x18] sm:$0xff]
          %v1709 = vld [vmem:[%s1704 + $0x20] sm:$0xff]
          %v1710 = vld [vmem:[%s1704 + $0x28] sm:$0xff]
          %v1711 = vunpack.c.l.bf16 %v1705
          %v1712 = vunpack.c.h.bf16 %v1705
          %v1713 = vunpack.c.l.bf16 %v1706
          %v1714 = vunpack.c.h.bf16 %v1706
          %v1715 = vunpack.c.l.bf16 %v1707
          %v1716 = vunpack.c.h.bf16 %v1707
          %v1717 = vunpack.c.l.bf16 %v1708
          %v1718 = vunpack.c.h.bf16 %v1708
          %v1719 = vunpack.c.l.bf16 %v1709
          %v1720 = vunpack.c.h.bf16 %v1709
          %v1721 = vunpack.c.l.bf16 %v1710
          %v1722 = vunpack.c.h.bf16 %v1710
          %v1723 = vpack.c.bf16 %v1702, %v1700
          %v1724 = vpack.c.bf16 %v1703, %v1701
          %1725 = vmatprep.subr.bf16.mxu0 %v815
          %1726 = vmatpush1.bf16.msra.mxu0 %v814
          %1727 = vmatprep.subr.bf16.mxu0 %v821
          %1728 = vmatpush1.bf16.msra.mxu0 %v820
          %1729 = vmatprep.subr.bf16.mxu0 %v827
          %1730 = vmatpush1.bf16.msra.mxu0 %v826
          %1731 = vmatprep.subr.bf16.mxu0 %v833
          %1732 = vmatpush1.bf16.msra.mxu0 %v832
          %1733 = vmatprep.subr.bf16.mxu0 %v839
          %1734 = vmatpush1.bf16.msra.mxu0 %v838
          %1735 = vmatprep.subr.bf16.mxu0 %v845
          %1736 = vmatpush1.bf16.msra.mxu0 %v844
          %1737 = vmatprep.subr.bf16.mxu0 %v851
          %1738 = vmatpush1.bf16.msra.mxu0 %v850
          %1739 = vmatprep.subr.bf16.mxu0 %v857
          %1740 = vmatpush1.bf16.msra.mxu0 %v856
          %1741 = vmatprep.subr.bf16.mxu0 %v863
          %1742 = vmatpush1.bf16.msra.mxu0 %v862
          %1743 = vmatprep.subr.bf16.mxu0 %v869
          %1744 = vmatpush1.bf16.msra.mxu0 %v868
          %1745 = vmatprep.subr.bf16.mxu0 %v875
          %1746 = vmatpush1.bf16.msra.mxu0 %v874
          %1747 = vmatprep.subr.bf16.mxu0 %v881
          %1748 = vmatpush1.bf16.msra.mxu0 %v880
          %1749 = vmatprep.subr.bf16.mxu0 %v887
          %1750 = vmatpush1.bf16.msra.mxu0 %v886
          %1751 = vmatprep.subr.bf16.mxu0 %v893
          %1752 = vmatpush1.bf16.msra.mxu0 %v892
          %1753 = vmatprep.subr.bf16.mxu0 %v899
          %1754 = vmatpush1.bf16.msra.mxu0 %v898
          %1755 = vmatprep.subr.bf16.mxu0 %v905
          %1756 = vmatpush1.bf16.msra.mxu0 %v904
          %1757 = vmatprep.mubr.bf16.mxu0 %v1724
          %1758 = vmatmul.mubr.bf16.gmra.mrb[0].mxu0 %v1723
          %v1759 = vpop.f32.mrb[0].mxu0
          %v1760 = vadd.f32 0.0, %v1759
          %v1761 = vpop.f32.mrb[0].mxu0
          %v1762 = vadd.f32 0.0, %v1761
          %v1763 = vpop.f32.mrb[0].mxu0
          %v1764 = vadd.f32 0.0, %v1763
          %v1765 = vpop.f32.mrb[0].mxu0
          %v1766 = vadd.f32 0.0, %v1765
          %1767 = vdwg.mxu0
          %1768 = vmatprep.subr.bf16.mxu0 %v817
          %1769 = vmatpush1.bf16.msra.mxu0 %v816
          %1770 = vmatprep.subr.bf16.mxu0 %v823
          %1771 = vmatpush1.bf16.msra.mxu0 %v822
          %1772 = vmatprep.subr.bf16.mxu0 %v829
          %1773 = vmatpush1.bf16.msra.mxu0 %v828
          %1774 = vmatprep.subr.bf16.mxu0 %v835
          %1775 = vmatpush1.bf16.msra.mxu0 %v834
          %1776 = vmatprep.subr.bf16.mxu0 %v841
          %1777 = vmatpush1.bf16.msra.mxu0 %v840
          %1778 = vmatprep.subr.bf16.mxu0 %v847
          %1779 = vmatpush1.bf16.msra.mxu0 %v846
          %1780 = vmatprep.subr.bf16.mxu0 %v853
          %1781 = vmatpush1.bf16.msra.mxu0 %v852
          %1782 = vmatprep.subr.bf16.mxu0 %v859
          %1783 = vmatpush1.bf16.msra.mxu0 %v858
          %1784 = vmatprep.subr.bf16.mxu0 %v865
          %1785 = vmatpush1.bf16.msra.mxu0 %v864
          %1786 = vmatprep.subr.bf16.mxu0 %v871
          %1787 = vmatpush1.bf16.msra.mxu0 %v870
          %1788 = vmatprep.subr.bf16.mxu0 %v877
          %1789 = vmatpush1.bf16.msra.mxu0 %v876
          %1790 = vmatprep.subr.bf16.mxu0 %v883
          %1791 = vmatpush1.bf16.msra.mxu0 %v882
          %1792 = vmatprep.subr.bf16.mxu0 %v889
          %1793 = vmatpush1.bf16.msra.mxu0 %v888
          %1794 = vmatprep.subr.bf16.mxu0 %v895
          %1795 = vmatpush1.bf16.msra.mxu0 %v894
          %1796 = vmatprep.subr.bf16.mxu0 %v901
          %1797 = vmatpush1.bf16.msra.mxu0 %v900
          %1798 = vmatprep.subr.bf16.mxu0 %v907
          %1799 = vmatpush1.bf16.msra.mxu0 %v906
          %1800 = vmatprep.mubr.bf16.mxu0 %v1724
          %1801 = vmatmul.mubr.bf16.gmra.mrb[0].mxu0 %v1723
          %v1802 = vpop.f32.mrb[0].mxu0
          %v1803 = vadd.f32 0.0, %v1802
          %v1804 = vpop.f32.mrb[0].mxu0
          %v1805 = vadd.f32 0.0, %v1804
          %v1806 = vpop.f32.mrb[0].mxu0
          %v1807 = vadd.f32 0.0, %v1806
          %v1808 = vpop.f32.mrb[0].mxu0
          %v1809 = vadd.f32 0.0, %v1808
          %1810 = vdwg.mxu0
          %1811 = vmatprep.subr.bf16.mxu0 %v819
          %1812 = vmatpush1.bf16.msra.mxu0 %v818
          %1813 = vmatprep.subr.bf16.mxu0 %v825
          %1814 = vmatpush1.bf16.msra.mxu0 %v824
          %1815 = vmatprep.subr.bf16.mxu0 %v831
          %1816 = vmatpush1.bf16.msra.mxu0 %v830
          %1817 = vmatprep.subr.bf16.mxu0 %v837
          %1818 = vmatpush1.bf16.msra.mxu0 %v836
          %1819 = vmatprep.subr.bf16.mxu0 %v843
          %1820 = vmatpush1.bf16.msra.mxu0 %v842
          %1821 = vmatprep.subr.bf16.mxu0 %v849
          %1822 = vmatpush1.bf16.msra.mxu0 %v848
          %1823 = vmatprep.subr.bf16.mxu0 %v855
          %1824 = vmatpush1.bf16.msra.mxu0 %v854
          %1825 = vmatprep.subr.bf16.mxu0 %v861
          %1826 = vmatpush1.bf16.msra.mxu0 %v860
          %1827 = vmatprep.subr.bf16.mxu0 %v867
          %1828 = vmatpush1.bf16.msra.mxu0 %v866
          %1829 = vmatprep.subr.bf16.mxu0 %v873
          %1830 = vmatpush1.bf16.msra.mxu0 %v872
          %1831 = vmatprep.subr.bf16.mxu0 %v879
          %1832 = vmatpush1.bf16.msra.mxu0 %v878
          %1833 = vmatprep.subr.bf16.mxu0 %v885
          %1834 = vmatpush1.bf16.msra.mxu0 %v884
          %1835 = vmatprep.subr.bf16.mxu0 %v891
          %1836 = vmatpush1.bf16.msra.mxu0 %v890
          %1837 = vmatprep.subr.bf16.mxu0 %v897
          %1838 = vmatpush1.bf16.msra.mxu0 %v896
          %1839 = vmatprep.subr.bf16.mxu0 %v903
          %1840 = vmatpush1.bf16.msra.mxu0 %v902
          %1841 = vmatprep.subr.bf16.mxu0 %v909
          %1842 = vmatpush1.bf16.msra.mxu0 %v908
          %1843 = vmatprep.mubr.bf16.mxu0 %v1724
          %1844 = vmatmul.mubr.bf16.gmra.mrb[0].mxu0 %v1723
          %v1845 = vpop.f32.mrb[0].mxu0
          %v1846 = vadd.f32 0.0, %v1845
          %v1847 = vpop.f32.mrb[0].mxu0
          %v1848 = vadd.f32 0.0, %v1847
          %v1849 = vpop.f32.mrb[0].mxu0
          %v1850 = vadd.f32 0.0, %v1849
          %v1851 = vpop.f32.mrb[0].mxu0
          %v1852 = vadd.f32 0.0, %v1851
          %1853 = vdwg.mxu0
          %v1854 = vadd.f32 %v1711, %v1760
          %v1855 = vadd.f32 %v1712, %v1762
          %v1856 = vadd.f32 %v1717, %v1764
          %v1857 = vadd.f32 %v1718, %v1766
          %v1858 = vmul.f32 %v1854, 0.5
          %v1859 = vmul.f32 %v1855, 0.5
          %v1860 = vmul.f32 %v1856, 0.5
          %v1861 = vmul.f32 %v1857, 0.5
          %v1862 = vtanh.pop %v1858
          %v1863 = vtanh.pop %v1859
          %v1864 = vtanh.pop %v1860
          %v1865 = vtanh.pop %v1861
          %v1866 = vmul.f32 %v1862, 0.5
          %v1867 = vmul.f32 %v1863, 0.5
          %v1868 = vmul.f32 %v1864, 0.5
          %v1869 = vmul.f32 %v1865, 0.5
          %v1870 = vadd.f32 %v1866, 0.5
          %v1871 = vadd.f32 %v1867, 0.5
          %v1872 = vadd.f32 %v1868, 0.5
          %v1873 = vadd.f32 %v1869, 0.5
          %v1874 = vadd.f32 %v1713, %v1803
          %v1875 = vadd.f32 %v1714, %v1805
          %v1876 = vadd.f32 %v1719, %v1807
          %v1877 = vadd.f32 %v1720, %v1809
          %v1878 = vmul.f32 %v1874, 0.5
          %v1879 = vmul.f32 %v1875, 0.5
          %v1880 = vmul.f32 %v1876, 0.5
          %v1881 = vmul.f32 %v1877, 0.5
          %v1882 = vtanh.pop %v1878
          %v1883 = vtanh.pop %v1879
          %v1884 = vtanh.pop %v1880
          %v1885 = vtanh.pop %v1881
          %v1886 = vmul.f32 %v1882, 0.5
          %v1887 = vmul.f32 %v1883, 0.5
          %v1888 = vmul.f32 %v1884, 0.5
          %v1889 = vmul.f32 %v1885, 0.5
          %v1890 = vadd.f32 %v1886, 0.5
          %v1891 = vadd.f32 %v1887, 0.5
          %v1892 = vadd.f32 %v1888, 0.5
          %v1893 = vadd.f32 %v1889, 0.5
          %v1894 = vadd.f32 %v1846, %v399
          %v1895 = vadd.f32 %v1848, %v403
          %v1896 = vadd.f32 %v1850, %v399
          %v1897 = vadd.f32 %v1852, %v403
          %v1898 = vmul.f32 %v1870, %v1894
          %v1899 = vmul.f32 %v1871, %v1895
          %v1900 = vmul.f32 %v1872, %v1896
          %v1901 = vmul.f32 %v1873, %v1897
          %v1902 = vadd.f32 %v1715, %v1898
          %v1903 = vadd.f32 %v1716, %v1899
          %v1904 = vadd.f32 %v1721, %v1900
          %v1905 = vadd.f32 %v1722, %v1901
          %v1906 = vtanh.pop %v1902
          %v1907 = vtanh.pop %v1903
          %v1908 = vtanh.pop %v1904
          %v1909 = vtanh.pop %v1905
          %v1910 = vsub.f32 1.0, %v1890
          %v1911 = vsub.f32 1.0, %v1891
          %v1912 = vsub.f32 1.0, %v1892
          %v1913 = vsub.f32 1.0, %v1893
          %v1914 = vmul.f32 %v1910, %v1906
          %v1915 = vmul.f32 %v1911, %v1907
          %v1916 = vmul.f32 %v1912, %v1908
          %v1917 = vmul.f32 %v1913, %v1909
          %v1918 = vmul.f32 %v1890, %v1700
          %v1919 = vmul.f32 %v1891, %v1701
          %v1920 = vmul.f32 %v1892, %v1702
          %v1921 = vmul.f32 %v1893, %v1703
          %v1922 = vadd.f32 %v1914, %v1918
          %v1923 = vadd.f32 %v1915, %v1919
          %v1924 = vadd.f32 %v1916, %v1920
          %v1925 = vadd.f32 %v1917, %v1921
          %s1926 = sadd.s32 %s378, 3
          %v1927 = vstv %s1926
          %vm1928 = vcmp.gt.s32.totalorder %v392, %v1927
          %vm1929 = vcmp.gt.s32.totalorder %v393, %v1927
          %v1930 = vsel %vm1928, 1, 0
          %v1931 = vsel %vm1929, 1, 0
          %1932 = vset.pattern.permute.xlu0 0
          %1933 = vperm.xlu0 %1932, %v1930
          %v1934 = vpop.permute.xlu0 %1933
          %1935 = vset.pattern.permute.xlu0 0
          %1936 = vperm.xlu0 %1935, %v1931
          %v1937 = vpop.permute.xlu0 %1936
          %vm1938 = vcmp.eq.s32.totalorder %v1934, 1
          %vm1939 = vcmp.eq.s32.totalorder %v1937, 1
          %v1940 = vsel %vm1938, %v1922, %v1700
          %v1941 = vsel %vm1938, %v1923, %v1701
          %v1942 = vsel %vm1939, %v1924, %v1702
          %v1943 = vsel %vm1939, %v1925, %v1703
          %1944 = vst [vmem:[#allocation2] sm:$0xff] %v1940
          %1945 = vst [vmem:[#allocation2 + $0x8] sm:$0xff] %v1941
          %1946 = vst [vmem:[#allocation2 + $0x10] sm:$0xff] %v1942
          %1947 = vst [vmem:[#allocation2 + $0x18] sm:$0xff] %v1943
        $region68: #{tpu_custom_call.1} parent=51 // pred_fallthru
          _
        %p1948 = scmp.eq.s32.totalorder %s31, 1
        // Predicated region
        $region69: #{tpu_custom_call.1} parent=51 // pred_check
          %p1949 = pneg %p1948
        $region70: #{tpu_custom_call.1} parent=51 // pred_check_branch
          %1951 = sbr.rel (%p1949) target = $region72
        $region71: #{tpu_custom_call.1} parent=51 // pred_region
          %v1952 = vld [vmem:[#allocation2] sm:$0xff]
          %v1953 = vld [vmem:[#allocation2 + $0x8] sm:$0xff]
          %v1954 = vld [vmem:[#allocation2 + $0x10] sm:$0xff]
          %v1955 = vld [vmem:[#allocation2 + $0x18] sm:$0xff]
          %v1956 = vpack.c.bf16 %v1954, %v1952
          %v1957 = vpack.c.bf16 %v1955, %v1953
          %v1958 = vld [vmem:[%s5] sm:$0xf]
          %v1959 = vld [vmem:[%s5 + $0x4] sm:$0xf]
          %v1960 = vld [vmem:[%s5 + $0x8] sm:$0xf]
          %v1961 = vld [vmem:[%s5 + $0xc] sm:$0xf]
          %v1962 = vld [vmem:[%s5 + $0x10] sm:$0xf]
          %v1963 = vld [vmem:[%s5 + $0x14] sm:$0xf]
          %v1964 = vld [vmem:[%s5 + $0x18] sm:$0xf]
          %v1965 = vld [vmem:[%s5 + $0x1c] sm:$0xf]
          %v1966 = vld [vmem:[%s5 + $0x20] sm:$0xf]
          %v1967 = vld [vmem:[%s5 + $0x24] sm:$0xf]
          %v1968 = vld [vmem:[%s5 + $0x28] sm:$0xf]
          %v1969 = vld [vmem:[%s5 + $0x2c] sm:$0xf]
          %v1970 = vld [vmem:[%s5 + $0x30] sm:$0xf]
          %v1971 = vld [vmem:[%s5 + $0x34] sm:$0xf]
          %v1972 = vld [vmem:[%s5 + $0x38] sm:$0xf]
          %v1973 = vld [vmem:[%s5 + $0x3c] sm:$0xf]
          %v1974 = vld [vmem:[%s5 + $0x40] sm:$0xf]
          %v1975 = vld [vmem:[%s5 + $0x44] sm:$0xf]
          %v1976 = vld [vmem:[%s5 + $0x48] sm:$0xf]
          %v1977 = vld [vmem:[%s5 + $0x4c] sm:$0xf]
          %v1978 = vld [vmem:[%s5 + $0x50] sm:$0xf]
          %v1979 = vld [vmem:[%s5 + $0x54] sm:$0xf]
          %v1980 = vld [vmem:[%s5 + $0x58] sm:$0xf]
          %v1981 = vld [vmem:[%s5 + $0x5c] sm:$0xf]
          %v1982 = vld [vmem:[%s5 + $0x60] sm:$0xf]
          %v1983 = vld [vmem:[%s5 + $0x64] sm:$0xf]
          %v1984 = vld [vmem:[%s5 + $0x68] sm:$0xf]
          %v1985 = vld [vmem:[%s5 + $0x6c] sm:$0xf]
          %v1986 = vld [vmem:[%s5 + $0x70] sm:$0xf]
          %v1987 = vld [vmem:[%s5 + $0x74] sm:$0xf]
          %v1988 = vld [vmem:[%s5 + $0x78] sm:$0xf]
          %v1989 = vld [vmem:[%s5 + $0x7c] sm:$0xf]
          %v1990 = vld [vmem:[%s6] sm:$0x1]
          %v1992 = vlaneseq
          %v1993 = vshrl.u32 %v1992, 7
          %v1994 = vsub.s32 0, %v1993
          %v1995 = vrot.slane %v1990, %v1994
          %v2029 = vunpack.c.l.b16 %v1958
          %v2030 = vunpack.c.l.b16 %v1959
          %v2031 = vunpack.c.l.b16 %v1960
          %v2032 = vunpack.c.l.b16 %v1961
          %v2033 = vunpack.c.l.b16 %v1962
          %v2034 = vunpack.c.l.b16 %v1963
          %v2035 = vunpack.c.l.b16 %v1964
          %v2036 = vunpack.c.l.b16 %v1965
          %v2037 = vunpack.c.l.b16 %v1966
          %v2038 = vunpack.c.l.b16 %v1967
          %v2039 = vunpack.c.l.b16 %v1968
          %v2040 = vunpack.c.l.b16 %v1969
          %v2041 = vunpack.c.l.b16 %v1970
          %v2042 = vunpack.c.l.b16 %v1971
          %v2043 = vunpack.c.l.b16 %v1972
          %v2044 = vunpack.c.l.b16 %v1973
          %v2045 = vunpack.c.l.b16 %v1974
          %v2046 = vunpack.c.l.b16 %v1975
          %v2047 = vunpack.c.l.b16 %v1976
          %v2048 = vunpack.c.l.b16 %v1977
          %v2049 = vunpack.c.l.b16 %v1978
          %v2050 = vunpack.c.l.b16 %v1979
          %v2051 = vunpack.c.l.b16 %v1980
          %v2052 = vunpack.c.l.b16 %v1981
          %v2053 = vunpack.c.l.b16 %v1982
          %v2054 = vunpack.c.l.b16 %v1983
          %v2055 = vunpack.c.l.b16 %v1984
          %v2056 = vunpack.c.l.b16 %v1985
          %v2057 = vunpack.c.l.b16 %v1986
          %v2058 = vunpack.c.l.b16 %v1987
          %v2059 = vunpack.c.l.b16 %v1988
          %v2060 = vunpack.c.l.b16 %v1989
          %v2061 = vpack.c.b16 %v2030, %v2029
          %v2062 = vpack.c.b16 %v2032, %v2031
          %v2063 = vpack.c.b16 %v2034, %v2033
          %v2064 = vpack.c.b16 %v2036, %v2035
          %v2065 = vpack.c.b16 %v2038, %v2037
          %v2066 = vpack.c.b16 %v2040, %v2039
          %v2067 = vpack.c.b16 %v2042, %v2041
          %v2068 = vpack.c.b16 %v2044, %v2043
          %v2069 = vpack.c.b16 %v2046, %v2045
          %v2070 = vpack.c.b16 %v2048, %v2047
          %v2071 = vpack.c.b16 %v2050, %v2049
          %v2072 = vpack.c.b16 %v2052, %v2051
          %v2073 = vpack.c.b16 %v2054, %v2053
          %v2074 = vpack.c.b16 %v2056, %v2055
          %v2075 = vpack.c.b16 %v2058, %v2057
          %v2076 = vpack.c.b16 %v2060, %v2059
          %2093 = vmatprep.subr.bf16.mxu0 0
          %2094 = vmatpush1.bf16.msra.mxu0 %v2061
          %2095 = vmatprep.subr.bf16.mxu0 0
          %2096 = vmatpush1.bf16.msra.mxu0 %v2062
          %2097 = vmatprep.subr.bf16.mxu0 0
          %2098 = vmatpush1.bf16.msra.mxu0 %v2063
          %2099 = vmatprep.subr.bf16.mxu0 0
          %2100 = vmatpush1.bf16.msra.mxu0 %v2064
          %2101 = vmatprep.subr.bf16.mxu0 0
          %2102 = vmatpush1.bf16.msra.mxu0 %v2065
          %2103 = vmatprep.subr.bf16.mxu0 0
          %2104 = vmatpush1.bf16.msra.mxu0 %v2066
          %2105 = vmatprep.subr.bf16.mxu0 0
          %2106 = vmatpush1.bf16.msra.mxu0 %v2067
          %2107 = vmatprep.subr.bf16.mxu0 0
          %2108 = vmatpush1.bf16.msra.mxu0 %v2068
          %2109 = vmatprep.subr.bf16.mxu0 0
          %2110 = vmatpush1.bf16.msra.mxu0 %v2069
          %2111 = vmatprep.subr.bf16.mxu0 0
          %2112 = vmatpush1.bf16.msra.mxu0 %v2070
          %2113 = vmatprep.subr.bf16.mxu0 0
          %2114 = vmatpush1.bf16.msra.mxu0 %v2071
          %2115 = vmatprep.subr.bf16.mxu0 0
          %2116 = vmatpush1.bf16.msra.mxu0 %v2072
          %2117 = vmatprep.subr.bf16.mxu0 0
          %2118 = vmatpush1.bf16.msra.mxu0 %v2073
          %2119 = vmatprep.subr.bf16.mxu0 0
          %2120 = vmatpush1.bf16.msra.mxu0 %v2074
          %2121 = vmatprep.subr.bf16.mxu0 0
          %2122 = vmatpush1.bf16.msra.mxu0 %v2075
          %2123 = vmatprep.subr.bf16.mxu0 0
          %2124 = vmatpush1.bf16.msra.mxu0 %v2076
          %2125 = vmatprep.mubr.bf16.mxu0 %v1957
          %2126 = vmatmul.mubr.bf16.gmra.mrb[0].mxu0 %v1956
          %v2127 = vpop.f32.mrb[0].mxu0
          %v2128 = vadd.f32 %v1995, %v2127
          %v2129 = vpop.f32.mrb[0].mxu0
          %v2130 = vpop.f32.mrb[0].mxu0
          %v2131 = vadd.f32 %v1995, %v2130
          %v2132 = vpop.f32.mrb[0].mxu0
          %2133 = vdwg.mxu0
          %v2134 = vmax.f32 %v2128, 0.0
          %v2135 = vmax.f32 %v2131, 0.0
          %v2136 = vpack.c.bf16 %v2135, %v2134
          %v2137 = vld [vmem:[%s7] sm:$0xf]
          %v2138 = vld [vmem:[%s7 + $0x4] sm:$0xf]
          %v2139 = vld [vmem:[%s7 + $0x8] sm:$0xf]
          %v2140 = vld [vmem:[%s7 + $0xc] sm:$0xf]
          %v2141 = vld [vmem:[%s7 + $0x10] sm:$0xf]
          %v2142 = vld [vmem:[%s7 + $0x14] sm:$0xf]
          %v2143 = vld [vmem:[%s7 + $0x18] sm:$0xf]
          %v2144 = vld [vmem:[%s7 + $0x1c] sm:$0xf]
          %v2145 = vld [vmem:[%s8] sm:$0x1]
          %v2147 = vlaneseq
          %v2148 = vshrl.u32 %v2147, 7
          %v2149 = vsub.s32 0, %v2148
          %v2150 = vrot.slane %v2145, %v2149
          %v2160 = vunpack.c.l.b16 %v2137
          %v2161 = vunpack.c.l.b16 %v2138
          %v2162 = vunpack.c.l.b16 %v2139
          %v2163 = vunpack.c.l.b16 %v2140
          %v2164 = vunpack.c.l.b16 %v2141
          %v2165 = vunpack.c.l.b16 %v2142
          %v2166 = vunpack.c.l.b16 %v2143
          %v2167 = vunpack.c.l.b16 %v2144
          %v2168 = vpack.c.b16 %v2161, %v2160
          %v2169 = vpack.c.b16 %v2163, %v2162
          %v2170 = vpack.c.b16 %v2165, %v2164
          %v2171 = vpack.c.b16 %v2167, %v2166
          %vm2176 = vcmask 523264
          %v2178 = vsel %vm2176, %v2136, 0
          %2180 = vmatprep.subr.bf16.mxu0 0
          %2181 = vmatpush1.bf16.msra.mxu0 %v2168
          %2182 = vmatprep.subr.bf16.mxu0 0
          %2183 = vmatpush1.bf16.msra.mxu0 %v2169
          %2184 = vmatprep.subr.bf16.mxu0 0
          %2185 = vmatpush1.bf16.msra.mxu0 %v2170
          %2186 = vmatprep.subr.bf16.mxu0 0
          %2187 = vmatpush1.bf16.msra.mxu0 %v2171
          %2188 = vmatprep.subr.bf16.mxu0 0
          %2189 = vmatpush1.bf16.msra.mxu0 0
          %2190 = vmatprep.subr.bf16.mxu0 0
          %2191 = vmatpush1.bf16.msra.mxu0 0
          %2192 = vmatprep.subr.bf16.mxu0 0
          %2193 = vmatpush1.bf16.msra.mxu0 0
          %2194 = vmatprep.subr.bf16.mxu0 0
          %2195 = vmatpush1.bf16.msra.mxu0 0
          %2196 = vmatprep.subr.bf16.mxu0 0
          %2197 = vmatpush1.bf16.msra.mxu0 0
          %2198 = vmatprep.subr.bf16.mxu0 0
          %2199 = vmatpush1.bf16.msra.mxu0 0
          %2200 = vmatprep.subr.bf16.mxu0 0
          %2201 = vmatpush1.bf16.msra.mxu0 0
          %2202 = vmatprep.subr.bf16.mxu0 0
          %2203 = vmatpush1.bf16.msra.mxu0 0
          %2204 = vmatprep.subr.bf16.mxu0 0
          %2205 = vmatpush1.bf16.msra.mxu0 0
          %2206 = vmatprep.subr.bf16.mxu0 0
          %2207 = vmatpush1.bf16.msra.mxu0 0
          %2208 = vmatprep.subr.bf16.mxu0 0
          %2209 = vmatpush1.bf16.msra.mxu0 0
          %2210 = vmatprep.subr.bf16.mxu0 0
          %2211 = vmatpush1.bf16.msra.mxu0 0
          %2212 = vmatprep.mubr.bf16.mxu0 0
          %2213 = vmatmul.mubr.bf16.gmra.mrb[0].mxu0 %v2178
          %v2214 = vpop.f32.mrb[0].mxu0
          %v2215 = vadd.f32 %v2150, %v2214
          %v2216 = vpop.f32.mrb[0].mxu0
          %v2217 = vpop.f32.mrb[0].mxu0
          %v2218 = vadd.f32 %v2150, %v2217
          %v2219 = vpop.f32.mrb[0].mxu0
          %2220 = vdwg.mxu0
          %v2221 = vxor.u32 %v2215, 2147483648
          %v2222 = vxor.u32 %v2218, 2147483648
          %v2223 = vmul.f32 %v2221, 1.442695
          %v2224 = vpow.pop %v2223
          %v2225 = vmul.f32 %v2222, 1.442695
          %v2226 = vpow.pop %v2225
          %v2227 = vadd.f32 %v2224, 1.0
          %v2228 = vadd.f32 %v2226, 1.0
          %v2229 = vrcp.pop %v2227
          %v2230 = vmul.f32 1.0, %v2229
          %v2231 = vrcp.pop %v2228
          %v2232 = vmul.f32 1.0, %v2231
          %2233 = vst [vmem:[#allocation10] sm:$0xff] %v2230
          %2234 = vst [vmem:[#allocation10 + $0x8] sm:$0xff] %v2232
        $region72: #{tpu_custom_call.1} parent=51 // pred_fallthru
          _
        // Predicated region
        $region73: #{tpu_custom_call.1} parent=51 // pred_check
          %p2235 = pneg %p236
        $region74: #{tpu_custom_call.1} parent=51 // pred_check_branch
          %2237 = sbr.rel (%p2235) target = $region76
        $region75: #{tpu_custom_call.1} parent=51 // pred_region
          %s2238 = smul.u32 2, %s30
          %s2240 = ssub.s32 256, 256
          %2241 = vsyncadd [#allocation7], %s2240
          %s2242 = smul.addr %s2238, 128
          %s2243 = scalar_lea.hbm %s9, %s2242
          %s2244 = sshll.u32 [#allocation10], 4
          %s2245 = int_to_ptr.vmem [resolvable:$true] %s2244
          %2250 = dma.vmem_to_hbm [thread:$0]  %s2245, 256, %s2243, [#allocation7], 128, 128, 8
        $region76: #{tpu_custom_call.1} parent=51 // pred_fallthru
          _
        // Predicated region
        $region77: #{tpu_custom_call.1} parent=51 // pred_check
          %p2251 = pneg %p236
        $region78: #{tpu_custom_call.1} parent=51 // pred_check_branch
          %2253 = sbr.rel (%p2251) target = $region80
        $region79: #{tpu_custom_call.1} parent=51 // pred_region
          %2254 = dma.done [#allocation7], 256
        $region80: #{tpu_custom_call.1} parent=51 // pred_fallthru
          _
      $region52: #{tpu_custom_call.1} parent=5 // pred_fallthru
        _
      %p2255 = scmp.le.s32.totalorder 2, %s21
      // Predicated region
      $region81: #{tpu_custom_call.1} parent=5 // pred_check
        %p2256 = pneg %p2255
      $region82: #{tpu_custom_call.1} parent=5 // pred_check_branch
        %2258 = sbr.rel (%p2256) target = $region84
      $region83: #{tpu_custom_call.1} parent=5 // pred_region
        %s2259 = ssub.s32 %s21, 2
      $region84: #{tpu_custom_call.1} parent=5 // pred_fallthru
        _
    $region6: #{tpu_custom_call.1} parent=1 // loop_footer
      %s25 = sadd.s32 1, %s21
    $region7: #{tpu_custom_call.1} parent=1 // loop_footer_branch
      %20 = sbr.rel target = $region3
    $region8: #{tpu_custom_call.1} parent=1 // loop_exit
      _
    %2260 = vsyncpa [#allocation6], 1
    %s2261 = scalar_lea.sflag [#allocation6], 1
    %2262 = vsyncpa %s2261, 1
    %2263 = vsyncpa [#allocation9], 1
    %2264 = vsyncpa [#allocation7], 1
    %s2265 = scalar_lea.sflag [#allocation7], 1
    %2266 = vsyncpa %s2265, 1

</llo_original>
